<compile_context>
chip_gen: v5e
topology: v5e:2x2
jax: 0.10.0
libtpu: 0.0.40
codegen_flags: <defaults>
</compile_context>

<pallas_src>
import functools

import jax
import jax.numpy as jnp
from jax.experimental import pallas as pl
from jax.experimental.pallas import tpu as pltpu


# ----------------------------- Fused whole-model kernel -----------------------------

def _fused_model_kernel(*refs, num_layers, ndirs, hidden, seq_len, batch,
                        vocab, emb_size, out_size):
    """Embedding -> num_layers x (bi)LSTM -> Linear, fully VMEM-resident."""
    S, B, H, V, E, O = seq_len, batch, hidden, vocab, emb_size, out_size
    G = 4 * H

    # ---- unpack refs: inputs..., output, scratch ----
    idx = 0
    tok_ref = refs[idx]; idx += 1            # (S*B, 1) int32
    emb_ref = refs[idx]; idx += 1            # (V, E)
    layer_refs = []
    for _ in range(num_layers):
        layer_refs.append((refs[idx], refs[idx + 1], refs[idx + 2]))  # wih, whh, b
        idx += 3
    wout_ref = refs[idx]; idx += 1           # (ndirs, H, O)
    outb_ref = refs[idx]; idx += 1           # (1, O)
    out_ref = refs[idx]; idx += 1            # (S*B, O)
    gx_ref = refs[idx]; idx += 1             # VMEM (S*B, ndirs*G)
    act_ref = refs[idx]; idx += 1            # VMEM (ndirs, S*B, H)

    # ---- Embedding lookup as a one-hot MXU matmul (no XLA gather launch) ----
    tok = tok_ref[...]                                                   # (S*B, 1)
    iota = jax.lax.broadcasted_iota(jnp.int32, (S * B, V), 1)
    onehot = (tok == iota).astype(jnp.float32)                           # (S*B, V)
    x0 = jnp.dot(onehot, emb_ref[...], preferred_element_type=jnp.float32)  # (S*B, E)
    # Dropout after embedding: eval-mode identity.

    for layer in range(num_layers):
        wih_ref, whh_ref, b_ref = layer_refs[layer]
        wih = wih_ref[...]                                               # (E_in, ndirs*G)

        # ---- batched input projection + bias, hoisted off the serial chain ----
        if layer == 0:
            gx = jnp.dot(x0, wih, preferred_element_type=jnp.float32)
        else:
            # Previous layer's output = concat(h_fwd, h_bwd) -> split the matmul
            # instead of materializing the concat.
            gx = jnp.dot(act_ref[0], wih[0:H, :], preferred_element_type=jnp.float32)
            if ndirs == 2:
                gx = gx + jnp.dot(act_ref[1], wih[H:2 * H, :],
                                  preferred_element_type=jnp.float32)
        gx = gx + jnp.broadcast_to(b_ref[...], (S * B, ndirs * G))
        gx_ref[...] = gx                                                 # (S*B, ndirs*G)
        # Inter-layer dropout: eval-mode identity.

        whh_f = whh_ref[0]                                               # (H, G), resident
        whh_b = whh_ref[1] if ndirs == 2 else None

        def step(t, carry, whh_f=whh_f, whh_b=whh_b):
            h_f, c_f, h_b, c_b = carry
            # ---- forward direction: timestep t ----
            off_f = pl.multiple_of(t * B, B)
            g_f = (gx_ref[pl.ds(off_f, B), 0:G]
                   + jnp.dot(h_f, whh_f, preferred_element_type=jnp.float32))
            sig_f = jax.nn.sigmoid(g_f)          # one whole-vreg EUP push (i, f, o)
            tnh_f = jnp.tanh(g_f)                # one whole-vreg EUP push (g slice used)
            c_fn = sig_f[:, H:2 * H] * c_f + sig_f[:, 0:H] * tnh_f[:, 2 * H:3 * H]
            h_fn = sig_f[:, 3 * H:4 * H] * jnp.tanh(c_fn)
            act_ref[0, pl.ds(off_f, B), :] = h_fn
            # ---- backward direction: timestep S-1-t (no jnp.flip anywhere) ----
            if ndirs == 2:
                off_b = pl.multiple_of((S - 1 - t) * B, B)
                g_b = (gx_ref[pl.ds(off_b, B), G:2 * G]
                       + jnp.dot(h_b, whh_b, preferred_element_type=jnp.float32))
                sig_b = jax.nn.sigmoid(g_b)
                tnh_b = jnp.tanh(g_b)
                c_bn = sig_b[:, H:2 * H] * c_b + sig_b[:, 0:H] * tnh_b[:, 2 * H:3 * H]
                h_bn = sig_b[:, 3 * H:4 * H] * jnp.tanh(c_bn)
                act_ref[1, pl.ds(off_b, B), :] = h_bn
            else:
                c_bn, h_bn = c_b, h_b
            return (h_fn, c_fn, h_bn, c_bn)

        zeros = jnp.zeros((B, H), jnp.float32)
        jax.lax.fori_loop(0, S, step, (zeros, zeros, zeros, zeros),
                          unroll=min(S, 8))     # bounded unroll (instr-memory safe)

    # ---- output Linear: one batched dot per direction, single bulk store ----
    logits = jnp.dot(act_ref[0], wout_ref[0], preferred_element_type=jnp.float32)
    if ndirs == 2:
        logits = logits + jnp.dot(act_ref[1], wout_ref[1],
                                  preferred_element_type=jnp.float32)
    out_ref[...] = logits + jnp.broadcast_to(outb_ref[...], (S * B, O))


# ----------------------------- Wrapper -----------------------------

def _round_up(x, m):
    return (x + m - 1) // m * m


def pack_params(weights, num_layers, bidirectional):
    """One-time weight repacking (transposes / concats) done outside the hot path."""
    ndirs = 2 if bidirectional else 1
    f32 = jnp.float32
    packed = {"emb": weights["embedding"].astype(f32), "layers": []}
    for layer in range(num_layers):
        lw = weights["lstm"][layer]
        wihs = [lw["w_ih"].T]
        whhs = [lw["w_hh"].T]
        bs = [(lw["b_ih"] + lw["b_hh"]).reshape(1, -1)]
        if bidirectional:
            wihs.append(lw["w_ih_rev"].T)
            whhs.append(lw["w_hh_rev"].T)
            bs.append((lw["b_ih_rev"] + lw["b_hh_rev"]).reshape(1, -1))
        packed["layers"].append({
            "wih": jnp.concatenate(wihs, axis=1).astype(f32),   # (E_in, ndirs*4H)
            "whh": jnp.stack(whhs).astype(f32),                 # (ndirs, H, 4H)
            "b": jnp.concatenate(bs, axis=1).astype(f32),       # (1, ndirs*4H)
        })
    H = weights["lstm"][0]["w_hh"].shape[1]
    out_w = weights["out_w"].astype(f32)                        # (O, ndirs*H)
    packed["wout"] = jnp.stack([out_w[:, d * H:(d + 1) * H].T for d in range(ndirs)])
    packed["out_b"] = weights["out_b"].astype(f32).reshape(1, -1)
    return packed


def char_annotation_forward(tokens, packed, num_layers, bidirectional):
    """tokens int32 (S, B) -> logits float32 (S, B, out_size). Eval-mode forward."""
    ndirs = 2 if bidirectional else 1
    S, B = tokens.shape
    Bp = max(8, _round_up(B, 8))                    # pad batch to 8 sublanes
    tokens_p = tokens if Bp == B else jnp.pad(tokens, ((0, 0), (0, Bp - B)))
    tok_flat = tokens_p.reshape(S * Bp, 1).astype(jnp.int32)

    emb = packed["emb"]
    V, E = emb.shape
    H = packed["layers"][0]["whh"].shape[1]
    O = packed["wout"].shape[-1]
    G = 4 * H

    inputs = [tok_flat, emb]
    for lp in packed["layers"]:
        inputs += [lp["wih"], lp["whh"], lp["b"]]
    inputs += [packed["wout"], packed["out_b"]]

    kernel = functools.partial(
        _fused_model_kernel, num_layers=num_layers, ndirs=ndirs, hidden=H,
        seq_len=S, batch=Bp, vocab=V, emb_size=E, out_size=O)

    # Advisory cost estimate so XLA schedules around the recurrent kernel.
    e_ins = [E] + [ndirs * H] * (num_layers - 1)
    flops = 2 * S * Bp * V * E
    for e_in in e_ins:
        flops += 2 * S * Bp * e_in * (ndirs * G)                 # batched x-projection
        flops += ndirs * S * (2 * Bp * H * G + 12 * Bp * H)      # recurrent dot + gates
    flops += 2 * S * Bp * (ndirs * H) * O
    trans = num_layers * ndirs * S * Bp * (2 * G + H)
    bytes_accessed = 4 * (S * Bp + V * E + ndirs * H * O + O + S * Bp * O
                          + sum(e_in * ndirs * G + ndirs * H * G + ndirs * G
                                for e_in in e_ins))

    out_flat = pl.pallas_call(
        kernel,
        out_shape=jax.ShapeDtypeStruct((S * Bp, O), jnp.float32),
        in_specs=[pl.BlockSpec(memory_space=pltpu.MemorySpace.VMEM)] * len(inputs),
        out_specs=pl.BlockSpec(memory_space=pltpu.MemorySpace.VMEM),
        scratch_shapes=[
            pltpu.VMEM((S * Bp, ndirs * G), jnp.float32),        # gx: x-proj + bias
            pltpu.VMEM((ndirs, S * Bp, H), jnp.float32),         # per-direction hiddens
        ],
        compiler_params=pltpu.CompilerParams(vmem_limit_bytes=32 * 1024 * 1024),
        cost_estimate=pl.CostEstimate(flops=int(flops), transcendentals=int(trans),
                                      bytes_accessed=int(bytes_accessed)),
    )(*inputs)

    out = out_flat.reshape(S, Bp, O)
    return out if Bp == B else out[:, :B]


# ----------------------------- Pure-JAX reference (for sanity) -----------------------------

def _lstm_ref_dir(x, w_ih, w_hh, b_ih, b_hh):
    _, B, _ = x.shape
    H = w_hh.shape[1]

    def step(carry, xt):
        h, c = carry
        gates = xt @ w_ih.T + b_ih + h @ w_hh.T + b_hh
        i = jax.nn.sigmoid(gates[:, :H])
        f = jax.nn.sigmoid(gates[:, H:2 * H])
        g = jnp.tanh(gates[:, 2 * H:3 * H])
        o = jax.nn.sigmoid(gates[:, 3 * H:])
        c = f * c + i * g
        h = o * jnp.tanh(c)
        return (h, c), h

    init = (jnp.zeros((B, H), jnp.float32), jnp.zeros((B, H), jnp.float32))
    _, hs = jax.lax.scan(step, init, x)
    return hs


def char_annotation_ref(tokens, weights, num_layers, bidirectional):
    h = jnp.take(weights["embedding"], tokens, axis=0)
    for layer in range(num_layers):
        lw = weights["lstm"][layer]
        h_fwd = _lstm_ref_dir(h, lw["w_ih"], lw["w_hh"], lw["b_ih"], lw["b_hh"])
        if bidirectional:
            h_bwd = jnp.flip(_lstm_ref_dir(jnp.flip(h, 0), lw["w_ih_rev"], lw["w_hh_rev"],
                                           lw["b_ih_rev"], lw["b_hh_rev"]), 0)
            h = jnp.concatenate([h_fwd, h_bwd], axis=-1)
        else:
            h = h_fwd
    return h @ weights["out_w"].T + weights["out_b"]


# ----------------------------- Main -----------------------------

def _build_weights(key, vocab_size, E, H, O, num_layers, bidirectional):
    num_dirs = 2 if bidirectional else 1
    k_bound = 1.0 / (H ** 0.5)
    keys = jax.random.split(key, 3 + 8 * num_layers)

    def uni(k, shape):
        return jax.random.uniform(k, shape, jnp.float32, -k_bound, k_bound)

    weights = {
        "embedding": jax.random.normal(keys[0], (vocab_size, E), jnp.float32),
        "lstm": [],
        "out_w": uni(keys[1], (O, H * num_dirs)),
        "out_b": uni(keys[2], (O,)),
    }
    idx = 3
    for layer in range(num_layers):
        in_sz = E if layer == 0 else H * num_dirs
        lw = {
            "w_ih": uni(keys[idx + 0], (4 * H, in_sz)),
            "w_hh": uni(keys[idx + 1], (4 * H, H)),
            "b_ih": uni(keys[idx + 2], (4 * H,)),
            "b_hh": uni(keys[idx + 3], (4 * H,)),
        }
        if bidirectional:
            lw.update({
                "w_ih_rev": uni(keys[idx + 4], (4 * H, in_sz)),
                "w_hh_rev": uni(keys[idx + 5], (4 * H, H)),
                "b_ih_rev": uni(keys[idx + 6], (4 * H,)),
                "b_hh_rev": uni(keys[idx + 7], (4 * H,)),
            })
        weights["lstm"].append(lw)
        idx += 8
    return weights


if __name__ == "__main__":
    vocab_size, embedding_size, hidden_size, out_size = 32, 16, 32, 8
    S, B = 8, 4   # time-major (seq, batch), nn.LSTM default batch_first=False

    root = jax.random.PRNGKey(0)
    k_tok, k_w = jax.random.split(root)
    tokens = jax.random.randint(k_tok, (S, B), 0, vocab_size, jnp.int32)

    # Config A: 1 bidirectional layer; B: 2 bidirectional layers; C: 1 unidirectional layer.
    for num_layers, bidirectional in [(1, True), (2, True), (1, False)]:
        weights = _build_weights(k_w, vocab_size, embedding_size, hidden_size,
                                 out_size, num_layers, bidirectional)
        packed = pack_params(weights, num_layers, bidirectional)
        out = char_annotation_forward(tokens, packed, num_layers, bidirectional)
        out = jax.block_until_ready(out)
        assert out.shape == (S, B, out_size), out.shape

        ref = char_annotation_ref(tokens, weights, num_layers, bidirectional)
        err = float(jnp.max(jnp.abs(out - ref)))
        assert jnp.allclose(out, ref, rtol=1e-3, atol=1e-3), err

    print("KERNEL_OK")
</pallas_src>

<mosaic_0001>
module attributes {stable_mosaic.version = 11 : i64} {
  func.func @_fused_model_kernel(%arg0: memref<64x1xi32, #tpu.memory_space<vmem>>, %arg1: memref<32x16xf32, #tpu.memory_space<vmem>>, %arg2: memref<16x256xf32, #tpu.memory_space<vmem>>, %arg3: memref<2x32x128xf32, #tpu.memory_space<vmem>>, %arg4: memref<1x256xf32, #tpu.memory_space<vmem>>, %arg5: memref<2x32x8xf32, #tpu.memory_space<vmem>>, %arg6: memref<1x8xf32, #tpu.memory_space<vmem>>, %arg7: memref<64x8xf32, #tpu.memory_space<vmem>>, %arg8: memref<64x256xf32, #tpu.memory_space<vmem>>, %arg9: memref<2x64x32xf32, #tpu.memory_space<vmem>>) attributes {dimension_semantics = [], scalar_prefetch = 0 : i64, scratch_operands = 2 : i64, tpu.core_type = #tpu.core_type<tc>} {
    %c0 = arith.constant 0 : index
    %c0_0 = arith.constant 0 : index
    %0 = vector.load %arg0[%c0, %c0_0] : memref<64x1xi32, #tpu.memory_space<vmem>>, vector<64x1xi32>
    %1 = tpu.iota {dimensions = array<i32: 1>} : vector<64x32xi32>
    %2 = vector.broadcast %0 : vector<64x1xi32> to vector<64x32xi32>
    %3 = arith.cmpi eq, %2, %1 : vector<64x32xi32>
    %4 = arith.extui %3 : vector<64x32xi1> to vector<64x32xi32>
    %5 = arith.sitofp %4 : vector<64x32xi32> to vector<64x32xf32>
    %c0_1 = arith.constant 0 : index
    %c0_2 = arith.constant 0 : index
    %6 = vector.load %arg1[%c0_1, %c0_2] : memref<32x16xf32, #tpu.memory_space<vmem>>, vector<32x16xf32>
    %cst = arith.constant dense<0.000000e+00> : vector<64x16xf32>
    %7 = tpu.matmul %5, %6, %cst {dimension_numbers = #tpu.dot_dimension_numbers<[1], [0], [0], [1], [0, 0, 1, 1], [], []>} : vector<64x32xf32>, vector<32x16xf32>, vector<64x16xf32> -> vector<64x16xf32>
    %c0_3 = arith.constant 0 : index
    %c0_4 = arith.constant 0 : index
    %8 = vector.load %arg2[%c0_3, %c0_4] : memref<16x256xf32, #tpu.memory_space<vmem>>, vector<16x256xf32>
    %cst_5 = arith.constant dense<0.000000e+00> : vector<64x256xf32>
    %9 = tpu.matmul %7, %8, %cst_5 {dimension_numbers = #tpu.dot_dimension_numbers<[1], [0], [0], [1], [0, 0, 1, 1], [], []>} : vector<64x16xf32>, vector<16x256xf32>, vector<64x256xf32> -> vector<64x256xf32>
    %c0_6 = arith.constant 0 : index
    %c0_7 = arith.constant 0 : index
    %10 = vector.load %arg4[%c0_6, %c0_7] : memref<1x256xf32, #tpu.memory_space<vmem>>, vector<1x256xf32>
    %11 = vector.shape_cast %10 : vector<1x256xf32> to vector<1x256xf32>
    %12 = vector.broadcast %11 : vector<1x256xf32> to vector<64x256xf32>
    %13 = arith.addf %9, %12 : vector<64x256xf32>
    %c0_8 = arith.constant 0 : index
    %c0_9 = arith.constant 0 : index
    %14 = vector.load %arg8[%c0_8, %c0_9] : memref<64x256xf32, #tpu.memory_space<vmem>>, vector<64x256xf32>
    tpu.vector_store %arg8[%c0_8, %c0_9], %13 {strides = array<i32>} : memref<64x256xf32, #tpu.memory_space<vmem>>, vector<64x256xf32>,
    %c0_10 = arith.constant 0 : index
    %c0_11 = arith.constant 0 : index
    %c0_12 = arith.constant 0 : index
    %15 = vector.load %arg3[%c0_10, %c0_11, %c0_12] : memref<2x32x128xf32, #tpu.memory_space<vmem>>, vector<1x32x128xf32>
    %16 = vector.shape_cast %15 : vector<1x32x128xf32> to vector<32x128xf32>
    %c1 = arith.constant 1 : index
    %c0_13 = arith.constant 0 : index
    %c0_14 = arith.constant 0 : index
    %17 = vector.load %arg3[%c1, %c0_13, %c0_14] : memref<2x32x128xf32, #tpu.memory_space<vmem>>, vector<1x32x128xf32>
    %18 = vector.shape_cast %17 : vector<1x32x128xf32> to vector<32x128xf32>
    %cst_15 = arith.constant 0.000000e+00 : f32
    %19 = vector.broadcast %cst_15 : f32 to vector<8x32xf32>
    %c0_i32 = arith.constant 0 : i32
    %c8_i32 = arith.constant 8 : i32
    %20 = arith.muli %c0_i32, %c8_i32 : i32
    %21 = tpu.assume_multiple %20, 8 : i32
    %22 = arith.index_cast %21 : i32 to index
    %c0_16 = arith.constant 0 : index
    %23 = vector.load %arg8[%22, %c0_16] : memref<64x256xf32, #tpu.memory_space<vmem>>, vector<8x128xf32>
    %cst_17 = arith.constant dense<0.000000e+00> : vector<8x128xf32>
    %24 = tpu.matmul %19, %16, %cst_17 {dimension_numbers = #tpu.dot_dimension_numbers<[1], [0], [0], [1], [0, 0, 1, 1], [], []>} : vector<8x32xf32>, vector<32x128xf32>, vector<8x128xf32> -> vector<8x128xf32>
    %25 = arith.addf %23, %24 : vector<8x128xf32>
    %26 = arith.negf %25 : vector<8x128xf32>
    %27 = math.exp %26 : vector<8x128xf32>
    %cst_18 = arith.constant 1.000000e+00 : f32
    %28 = vector.broadcast %cst_18 : f32 to vector<8x128xf32>
    %29 = arith.addf %28, %27 : vector<8x128xf32>
    %30 = arith.divf %28, %29 : vector<8x128xf32>
    %31 = math.tanh %25 : vector<8x128xf32>
    %32 = vector.extract_strided_slice %30 {offsets = [0, 32], sizes = [8, 32], strides = [1, 1]} : vector<8x128xf32> to vector<8x32xf32>
    %33 = arith.mulf %32, %19 : vector<8x32xf32>
    %34 = vector.extract_strided_slice %30 {offsets = [0, 0], sizes = [8, 32], strides = [1, 1]} : vector<8x128xf32> to vector<8x32xf32>
    %35 = vector.extract_strided_slice %31 {offsets = [0, 64], sizes = [8, 32], strides = [1, 1]} : vector<8x128xf32> to vector<8x32xf32>
    %36 = arith.mulf %34, %35 : vector<8x32xf32>
    %37 = arith.addf %33, %36 : vector<8x32xf32>
    %38 = vector.extract_strided_slice %30 {offsets = [0, 96], sizes = [8, 32], strides = [1, 1]} : vector<8x128xf32> to vector<8x32xf32>
    %39 = math.tanh %37 : vector<8x32xf32>
    %40 = arith.mulf %38, %39 : vector<8x32xf32>
    %c0_19 = arith.constant 0 : index
    %41 = arith.index_cast %21 : i32 to index
    %c0_20 = arith.constant 0 : index
    %42 = vector.load %arg9[%c0_19, %41, %c0_20] : memref<2x64x32xf32, #tpu.memory_space<vmem>>, vector<1x8x32xf32>
    %43 = vector.shape_cast %42 : vector<1x8x32xf32> to vector<8x32xf32>
    %44 = vector.shape_cast %40 : vector<8x32xf32> to vector<1x8x32xf32>
    tpu.vector_store %arg9[%c0_19, %41, %c0_20], %44 {strides = array<i32>} : memref<2x64x32xf32, #tpu.memory_space<vmem>>, vector<1x8x32xf32>,
    %c7_i32 = arith.constant 7 : i32
    %45 = arith.subi %c7_i32, %c0_i32 : i32
    %c8_i32_21 = arith.constant 8 : i32
    %46 = arith.muli %45, %c8_i32_21 : i32
    %47 = tpu.assume_multiple %46, 8 : i32
    %48 = arith.index_cast %47 : i32 to index
    %c128 = arith.constant 128 : index
    %49 = vector.load %arg8[%48, %c128] : memref<64x256xf32, #tpu.memory_space<vmem>>, vector<8x128xf32>
    %cst_22 = arith.constant dense<0.000000e+00> : vector<8x128xf32>
    %50 = tpu.matmul %19, %18, %cst_22 {dimension_numbers = #tpu.dot_dimension_numbers<[1], [0], [0], [1], [0, 0, 1, 1], [], []>} : vector<8x32xf32>, vector<32x128xf32>, vector<8x128xf32> -> vector<8x128xf32>
    %51 = arith.addf %49, %50 : vector<8x128xf32>
    %52 = arith.negf %51 : vector<8x128xf32>
    %53 = math.exp %52 : vector<8x128xf32>
    %cst_23 = arith.constant 1.000000e+00 : f32
    %54 = vector.broadcast %cst_23 : f32 to vector<8x128xf32>
    %55 = arith.addf %54, %53 : vector<8x128xf32>
    %56 = arith.divf %54, %55 : vector<8x128xf32>
    %57 = math.tanh %51 : vector<8x128xf32>
    %58 = vector.extract_strided_slice %56 {offsets = [0, 32], sizes = [8, 32], strides = [1, 1]} : vector<8x128xf32> to vector<8x32xf32>
    %59 = arith.mulf %58, %19 : vector<8x32xf32>
    %60 = vector.extract_strided_slice %56 {offsets = [0, 0], sizes = [8, 32], strides = [1, 1]} : vector<8x128xf32> to vector<8x32xf32>
    %61 = vector.extract_strided_slice %57 {offsets = [0, 64], sizes = [8, 32], strides = [1, 1]} : vector<8x128xf32> to vector<8x32xf32>
    %62 = arith.mulf %60, %61 : vector<8x32xf32>
    %63 = arith.addf %59, %62 : vector<8x32xf32>
    %64 = vector.extract_strided_slice %56 {offsets = [0, 96], sizes = [8, 32], strides = [1, 1]} : vector<8x128xf32> to vector<8x32xf32>
    %65 = math.tanh %63 : vector<8x32xf32>
    %66 = arith.mulf %64, %65 : vector<8x32xf32>
    %c1_24 = arith.constant 1 : index
    %67 = arith.index_cast %47 : i32 to index
    %c0_25 = arith.constant 0 : index
    %68 = vector.load %arg9[%c1_24, %67, %c0_25] : memref<2x64x32xf32, #tpu.memory_space<vmem>>, vector<1x8x32xf32>
    %69 = vector.shape_cast %68 : vector<1x8x32xf32> to vector<8x32xf32>
    %70 = vector.shape_cast %66 : vector<8x32xf32> to vector<1x8x32xf32>
    tpu.vector_store %arg9[%c1_24, %67, %c0_25], %70 {strides = array<i32>} : memref<2x64x32xf32, #tpu.memory_space<vmem>>, vector<1x8x32xf32>,
    %c1_i32 = arith.constant 1 : i32
    %c8_i32_26 = arith.constant 8 : i32
    %71 = arith.muli %c1_i32, %c8_i32_26 : i32
    %72 = tpu.assume_multiple %71, 8 : i32
    %73 = arith.index_cast %72 : i32 to index
    %c0_27 = arith.constant 0 : index
    %74 = vector.load %arg8[%73, %c0_27] : memref<64x256xf32, #tpu.memory_space<vmem>>, vector<8x128xf32>
    %cst_28 = arith.constant dense<0.000000e+00> : vector<8x128xf32>
    %75 = tpu.matmul %40, %16, %cst_28 {dimension_numbers = #tpu.dot_dimension_numbers<[1], [0], [0], [1], [0, 0, 1, 1], [], []>} : vector<8x32xf32>, vector<32x128xf32>, vector<8x128xf32> -> vector<8x128xf32>
    %76 = arith.addf %74, %75 : vector<8x128xf32>
    %77 = arith.negf %76 : vector<8x128xf32>
    %78 = math.exp %77 : vector<8x128xf32>
    %cst_29 = arith.constant 1.000000e+00 : f32
    %79 = vector.broadcast %cst_29 : f32 to vector<8x128xf32>
    %80 = arith.addf %79, %78 : vector<8x128xf32>
    %81 = arith.divf %79, %80 : vector<8x128xf32>
    %82 = math.tanh %76 : vector<8x128xf32>
    %83 = vector.extract_strided_slice %81 {offsets = [0, 32], sizes = [8, 32], strides = [1, 1]} : vector<8x128xf32> to vector<8x32xf32>
    %84 = arith.mulf %83, %37 : vector<8x32xf32>
    %85 = vector.extract_strided_slice %81 {offsets = [0, 0], sizes = [8, 32], strides = [1, 1]} : vector<8x128xf32> to vector<8x32xf32>
    %86 = vector.extract_strided_slice %82 {offsets = [0, 64], sizes = [8, 32], strides = [1, 1]} : vector<8x128xf32> to vector<8x32xf32>
    %87 = arith.mulf %85, %86 : vector<8x32xf32>
    %88 = arith.addf %84, %87 : vector<8x32xf32>
    %89 = vector.extract_strided_slice %81 {offsets = [0, 96], sizes = [8, 32], strides = [1, 1]} : vector<8x128xf32> to vector<8x32xf32>
    %90 = math.tanh %88 : vector<8x32xf32>
    %91 = arith.mulf %89, %90 : vector<8x32xf32>
    %c0_30 = arith.constant 0 : index
    %92 = arith.index_cast %72 : i32 to index
    %c0_31 = arith.constant 0 : index
    %93 = vector.load %arg9[%c0_30, %92, %c0_31] : memref<2x64x32xf32, #tpu.memory_space<vmem>>, vector<1x8x32xf32>
    %94 = vector.shape_cast %93 : vector<1x8x32xf32> to vector<8x32xf32>
    %95 = vector.shape_cast %91 : vector<8x32xf32> to vector<1x8x32xf32>
    tpu.vector_store %arg9[%c0_30, %92, %c0_31], %95 {strides = array<i32>} : memref<2x64x32xf32, #tpu.memory_space<vmem>>, vector<1x8x32xf32>,
    %c7_i32_32 = arith.constant 7 : i32
    %96 = arith.subi %c7_i32_32, %c1_i32 : i32
    %c8_i32_33 = arith.constant 8 : i32
    %97 = arith.muli %96, %c8_i32_33 : i32
    %98 = tpu.assume_multiple %97, 8 : i32
    %99 = arith.index_cast %98 : i32 to index
    %c128_34 = arith.constant 128 : index
    %100 = vector.load %arg8[%99, %c128_34] : memref<64x256xf32, #tpu.memory_space<vmem>>, vector<8x128xf32>
    %cst_35 = arith.constant dense<0.000000e+00> : vector<8x128xf32>
    %101 = tpu.matmul %66, %18, %cst_35 {dimension_numbers = #tpu.dot_dimension_numbers<[1], [0], [0], [1], [0, 0, 1, 1], [], []>} : vector<8x32xf32>, vector<32x128xf32>, vector<8x128xf32> -> vector<8x128xf32>
    %102 = arith.addf %100, %101 : vector<8x128xf32>
    %103 = arith.negf %102 : vector<8x128xf32>
    %104 = math.exp %103 : vector<8x128xf32>
    %cst_36 = arith.constant 1.000000e+00 : f32
    %105 = vector.broadcast %cst_36 : f32 to vector<8x128xf32>
    %106 = arith.addf %105, %104 : vector<8x128xf32>
    %107 = arith.divf %105, %106 : vector<8x128xf32>
    %108 = math.tanh %102 : vector<8x128xf32>
    %109 = vector.extract_strided_slice %107 {offsets = [0, 32], sizes = [8, 32], strides = [1, 1]} : vector<8x128xf32> to vector<8x32xf32>
    %110 = arith.mulf %109, %63 : vector<8x32xf32>
    %111 = vector.extract_strided_slice %107 {offsets = [0, 0], sizes = [8, 32], strides = [1, 1]} : vector<8x128xf32> to vector<8x32xf32>
    %112 = vector.extract_strided_slice %108 {offsets = [0, 64], sizes = [8, 32], strides = [1, 1]} : vector<8x128xf32> to vector<8x32xf32>
    %113 = arith.mulf %111, %112 : vector<8x32xf32>
    %114 = arith.addf %110, %113 : vector<8x32xf32>
    %115 = vector.extract_strided_slice %107 {offsets = [0, 96], sizes = [8, 32], strides = [1, 1]} : vector<8x128xf32> to vector<8x32xf32>
    %116 = math.tanh %114 : vector<8x32xf32>
    %117 = arith.mulf %115, %116 : vector<8x32xf32>
    %c1_37 = arith.constant 1 : index
    %118 = arith.index_cast %98 : i32 to index
    %c0_38 = arith.constant 0 : index
    %119 = vector.load %arg9[%c1_37, %118, %c0_38] : memref<2x64x32xf32, #tpu.memory_space<vmem>>, vector<1x8x32xf32>
    %120 = vector.shape_cast %119 : vector<1x8x32xf32> to vector<8x32xf32>
    %121 = vector.shape_cast %117 : vector<8x32xf32> to vector<1x8x32xf32>
    tpu.vector_store %arg9[%c1_37, %118, %c0_38], %121 {strides = array<i32>} : memref<2x64x32xf32, #tpu.memory_space<vmem>>, vector<1x8x32xf32>,
    %c2_i32 = arith.constant 2 : i32
    %c8_i32_39 = arith.constant 8 : i32
    %122 = arith.muli %c2_i32, %c8_i32_39 : i32
    %123 = tpu.assume_multiple %122, 8 : i32
    %124 = arith.index_cast %123 : i32 to index
    %c0_40 = arith.constant 0 : index
    %125 = vector.load %arg8[%124, %c0_40] : memref<64x256xf32, #tpu.memory_space<vmem>>, vector<8x128xf32>
    %cst_41 = arith.constant dense<0.000000e+00> : vector<8x128xf32>
    %126 = tpu.matmul %91, %16, %cst_41 {dimension_numbers = #tpu.dot_dimension_numbers<[1], [0], [0], [1], [0, 0, 1, 1], [], []>} : vector<8x32xf32>, vector<32x128xf32>, vector<8x128xf32> -> vector<8x128xf32>
    %127 = arith.addf %125, %126 : vector<8x128xf32>
    %128 = arith.negf %127 : vector<8x128xf32>
    %129 = math.exp %128 : vector<8x128xf32>
    %cst_42 = arith.constant 1.000000e+00 : f32
    %130 = vector.broadcast %cst_42 : f32 to vector<8x128xf32>
    %131 = arith.addf %130, %129 : vector<8x128xf32>
    %132 = arith.divf %130, %131 : vector<8x128xf32>
    %133 = math.tanh %127 : vector<8x128xf32>
    %134 = vector.extract_strided_slice %132 {offsets = [0, 32], sizes = [8, 32], strides = [1, 1]} : vector<8x128xf32> to vector<8x32xf32>
    %135 = arith.mulf %134, %88 : vector<8x32xf32>
    %136 = vector.extract_strided_slice %132 {offsets = [0, 0], sizes = [8, 32], strides = [1, 1]} : vector<8x128xf32> to vector<8x32xf32>
    %137 = vector.extract_strided_slice %133 {offsets = [0, 64], sizes = [8, 32], strides = [1, 1]} : vector<8x128xf32> to vector<8x32xf32>
    %138 = arith.mulf %136, %137 : vector<8x32xf32>
    %139 = arith.addf %135, %138 : vector<8x32xf32>
    %140 = vector.extract_strided_slice %132 {offsets = [0, 96], sizes = [8, 32], strides = [1, 1]} : vector<8x128xf32> to vector<8x32xf32>
    %141 = math.tanh %139 : vector<8x32xf32>
    %142 = arith.mulf %140, %141 : vector<8x32xf32>
    %c0_43 = arith.constant 0 : index
    %143 = arith.index_cast %123 : i32 to index
    %c0_44 = arith.constant 0 : index
    %144 = vector.load %arg9[%c0_43, %143, %c0_44] : memref<2x64x32xf32, #tpu.memory_space<vmem>>, vector<1x8x32xf32>
    %145 = vector.shape_cast %144 : vector<1x8x32xf32> to vector<8x32xf32>
    %146 = vector.shape_cast %142 : vector<8x32xf32> to vector<1x8x32xf32>
    tpu.vector_store %arg9[%c0_43, %143, %c0_44], %146 {strides = array<i32>} : memref<2x64x32xf32, #tpu.memory_space<vmem>>, vector<1x8x32xf32>,
    %c7_i32_45 = arith.constant 7 : i32
    %147 = arith.subi %c7_i32_45, %c2_i32 : i32
    %c8_i32_46 = arith.constant 8 : i32
    %148 = arith.muli %147, %c8_i32_46 : i32
    %149 = tpu.assume_multiple %148, 8 : i32
    %150 = arith.index_cast %149 : i32 to index
    %c128_47 = arith.constant 128 : index
    %151 = vector.load %arg8[%150, %c128_47] : memref<64x256xf32, #tpu.memory_space<vmem>>, vector<8x128xf32>
    %cst_48 = arith.constant dense<0.000000e+00> : vector<8x128xf32>
    %152 = tpu.matmul %117, %18, %cst_48 {dimension_numbers = #tpu.dot_dimension_numbers<[1], [0], [0], [1], [0, 0, 1, 1], [], []>} : vector<8x32xf32>, vector<32x128xf32>, vector<8x128xf32> -> vector<8x128xf32>
    %153 = arith.addf %151, %152 : vector<8x128xf32>
    %154 = arith.negf %153 : vector<8x128xf32>
    %155 = math.exp %154 : vector<8x128xf32>
    %cst_49 = arith.constant 1.000000e+00 : f32
    %156 = vector.broadcast %cst_49 : f32 to vector<8x128xf32>
    %157 = arith.addf %156, %155 : vector<8x128xf32>
    %158 = arith.divf %156, %157 : vector<8x128xf32>
    %159 = math.tanh %153 : vector<8x128xf32>
    %160 = vector.extract_strided_slice %158 {offsets = [0, 32], sizes = [8, 32], strides = [1, 1]} : vector<8x128xf32> to vector<8x32xf32>
    %161 = arith.mulf %160, %114 : vector<8x32xf32>
    %162 = vector.extract_strided_slice %158 {offsets = [0, 0], sizes = [8, 32], strides = [1, 1]} : vector<8x128xf32> to vector<8x32xf32>
    %163 = vector.extract_strided_slice %159 {offsets = [0, 64], sizes = [8, 32], strides = [1, 1]} : vector<8x128xf32> to vector<8x32xf32>
    %164 = arith.mulf %162, %163 : vector<8x32xf32>
    %165 = arith.addf %161, %164 : vector<8x32xf32>
    %166 = vector.extract_strided_slice %158 {offsets = [0, 96], sizes = [8, 32], strides = [1, 1]} : vector<8x128xf32> to vector<8x32xf32>
    %167 = math.tanh %165 : vector<8x32xf32>
    %168 = arith.mulf %166, %167 : vector<8x32xf32>
    %c1_50 = arith.constant 1 : index
    %169 = arith.index_cast %149 : i32 to index
    %c0_51 = arith.constant 0 : index
    %170 = vector.load %arg9[%c1_50, %169, %c0_51] : memref<2x64x32xf32, #tpu.memory_space<vmem>>, vector<1x8x32xf32>
    %171 = vector.shape_cast %170 : vector<1x8x32xf32> to vector<8x32xf32>
    %172 = vector.shape_cast %168 : vector<8x32xf32> to vector<1x8x32xf32>
    tpu.vector_store %arg9[%c1_50, %169, %c0_51], %172 {strides = array<i32>} : memref<2x64x32xf32, #tpu.memory_space<vmem>>, vector<1x8x32xf32>,
    %c3_i32 = arith.constant 3 : i32
    %c8_i32_52 = arith.constant 8 : i32
    %173 = arith.muli %c3_i32, %c8_i32_52 : i32
    %174 = tpu.assume_multiple %173, 8 : i32
    %175 = arith.index_cast %174 : i32 to index
    %c0_53 = arith.constant 0 : index
    %176 = vector.load %arg8[%175, %c0_53] : memref<64x256xf32, #tpu.memory_space<vmem>>, vector<8x128xf32>
    %cst_54 = arith.constant dense<0.000000e+00> : vector<8x128xf32>
    %177 = tpu.matmul %142, %16, %cst_54 {dimension_numbers = #tpu.dot_dimension_numbers<[1], [0], [0], [1], [0, 0, 1, 1], [], []>} : vector<8x32xf32>, vector<32x128xf32>, vector<8x128xf32> -> vector<8x128xf32>
    %178 = arith.addf %176, %177 : vector<8x128xf32>
    %179 = arith.negf %178 : vector<8x128xf32>
    %180 = math.exp %179 : vector<8x128xf32>
    %cst_55 = arith.constant 1.000000e+00 : f32
    %181 = vector.broadcast %cst_55 : f32 to vector<8x128xf32>
    %182 = arith.addf %181, %180 : vector<8x128xf32>
    %183 = arith.divf %181, %182 : vector<8x128xf32>
    %184 = math.tanh %178 : vector<8x128xf32>
    %185 = vector.extract_strided_slice %183 {offsets = [0, 32], sizes = [8, 32], strides = [1, 1]} : vector<8x128xf32> to vector<8x32xf32>
    %186 = arith.mulf %185, %139 : vector<8x32xf32>
    %187 = vector.extract_strided_slice %183 {offsets = [0, 0], sizes = [8, 32], strides = [1, 1]} : vector<8x128xf32> to vector<8x32xf32>
    %188 = vector.extract_strided_slice %184 {offsets = [0, 64], sizes = [8, 32], strides = [1, 1]} : vector<8x128xf32> to vector<8x32xf32>
    %189 = arith.mulf %187, %188 : vector<8x32xf32>
    %190 = arith.addf %186, %189 : vector<8x32xf32>
    %191 = vector.extract_strided_slice %183 {offsets = [0, 96], sizes = [8, 32], strides = [1, 1]} : vector<8x128xf32> to vector<8x32xf32>
    %192 = math.tanh %190 : vector<8x32xf32>
    %193 = arith.mulf %191, %192 : vector<8x32xf32>
    %c0_56 = arith.constant 0 : index
    %194 = arith.index_cast %174 : i32 to index
    %c0_57 = arith.constant 0 : index
    %195 = vector.load %arg9[%c0_56, %194, %c0_57] : memref<2x64x32xf32, #tpu.memory_space<vmem>>, vector<1x8x32xf32>
    %196 = vector.shape_cast %195 : vector<1x8x32xf32> to vector<8x32xf32>
    %197 = vector.shape_cast %193 : vector<8x32xf32> to vector<1x8x32xf32>
    tpu.vector_store %arg9[%c0_56, %194, %c0_57], %197 {strides = array<i32>} : memref<2x64x32xf32, #tpu.memory_space<vmem>>, vector<1x8x32xf32>,
    %c7_i32_58 = arith.constant 7 : i32
    %198 = arith.subi %c7_i32_58, %c3_i32 : i32
    %c8_i32_59 = arith.constant 8 : i32
    %199 = arith.muli %198, %c8_i32_59 : i32
    %200 = tpu.assume_multiple %199, 8 : i32
    %201 = arith.index_cast %200 : i32 to index
    %c128_60 = arith.constant 128 : index
    %202 = vector.load %arg8[%201, %c128_60] : memref<64x256xf32, #tpu.memory_space<vmem>>, vector<8x128xf32>
    %cst_61 = arith.constant dense<0.000000e+00> : vector<8x128xf32>
    %203 = tpu.matmul %168, %18, %cst_61 {dimension_numbers = #tpu.dot_dimension_numbers<[1], [0], [0], [1], [0, 0, 1, 1], [], []>} : vector<8x32xf32>, vector<32x128xf32>, vector<8x128xf32> -> vector<8x128xf32>
    %204 = arith.addf %202, %203 : vector<8x128xf32>
    %205 = arith.negf %204 : vector<8x128xf32>
    %206 = math.exp %205 : vector<8x128xf32>
    %cst_62 = arith.constant 1.000000e+00 : f32
    %207 = vector.broadcast %cst_62 : f32 to vector<8x128xf32>
    %208 = arith.addf %207, %206 : vector<8x128xf32>
    %209 = arith.divf %207, %208 : vector<8x128xf32>
    %210 = math.tanh %204 : vector<8x128xf32>
    %211 = vector.extract_strided_slice %209 {offsets = [0, 32], sizes = [8, 32], strides = [1, 1]} : vector<8x128xf32> to vector<8x32xf32>
    %212 = arith.mulf %211, %165 : vector<8x32xf32>
    %213 = vector.extract_strided_slice %209 {offsets = [0, 0], sizes = [8, 32], strides = [1, 1]} : vector<8x128xf32> to vector<8x32xf32>
    %214 = vector.extract_strided_slice %210 {offsets = [0, 64], sizes = [8, 32], strides = [1, 1]} : vector<8x128xf32> to vector<8x32xf32>
    %215 = arith.mulf %213, %214 : vector<8x32xf32>
    %216 = arith.addf %212, %215 : vector<8x32xf32>
    %217 = vector.extract_strided_slice %209 {offsets = [0, 96], sizes = [8, 32], strides = [1, 1]} : vector<8x128xf32> to vector<8x32xf32>
    %218 = math.tanh %216 : vector<8x32xf32>
    %219 = arith.mulf %217, %218 : vector<8x32xf32>
    %c1_63 = arith.constant 1 : index
    %220 = arith.index_cast %200 : i32 to index
    %c0_64 = arith.constant 0 : index
    %221 = vector.load %arg9[%c1_63, %220, %c0_64] : memref<2x64x32xf32, #tpu.memory_space<vmem>>, vector<1x8x32xf32>
    %222 = vector.shape_cast %221 : vector<1x8x32xf32> to vector<8x32xf32>
    %223 = vector.shape_cast %219 : vector<8x32xf32> to vector<1x8x32xf32>
    tpu.vector_store %arg9[%c1_63, %220, %c0_64], %223 {strides = array<i32>} : memref<2x64x32xf32, #tpu.memory_space<vmem>>, vector<1x8x32xf32>,
    %c4_i32 = arith.constant 4 : i32
    %c8_i32_65 = arith.constant 8 : i32
    %224 = arith.muli %c4_i32, %c8_i32_65 : i32
    %225 = tpu.assume_multiple %224, 8 : i32
    %226 = arith.index_cast %225 : i32 to index
    %c0_66 = arith.constant 0 : index
    %227 = vector.load %arg8[%226, %c0_66] : memref<64x256xf32, #tpu.memory_space<vmem>>, vector<8x128xf32>
    %cst_67 = arith.constant dense<0.000000e+00> : vector<8x128xf32>
    %228 = tpu.matmul %193, %16, %cst_67 {dimension_numbers = #tpu.dot_dimension_numbers<[1], [0], [0], [1], [0, 0, 1, 1], [], []>} : vector<8x32xf32>, vector<32x128xf32>, vector<8x128xf32> -> vector<8x128xf32>
    %229 = arith.addf %227, %228 : vector<8x128xf32>
    %230 = arith.negf %229 : vector<8x128xf32>
    %231 = math.exp %230 : vector<8x128xf32>
    %cst_68 = arith.constant 1.000000e+00 : f32
    %232 = vector.broadcast %cst_68 : f32 to vector<8x128xf32>
    %233 = arith.addf %232, %231 : vector<8x128xf32>
    %234 = arith.divf %232, %233 : vector<8x128xf32>
    %235 = math.tanh %229 : vector<8x128xf32>
    %236 = vector.extract_strided_slice %234 {offsets = [0, 32], sizes = [8, 32], strides = [1, 1]} : vector<8x128xf32> to vector<8x32xf32>
    %237 = arith.mulf %236, %190 : vector<8x32xf32>
    %238 = vector.extract_strided_slice %234 {offsets = [0, 0], sizes = [8, 32], strides = [1, 1]} : vector<8x128xf32> to vector<8x32xf32>
    %239 = vector.extract_strided_slice %235 {offsets = [0, 64], sizes = [8, 32], strides = [1, 1]} : vector<8x128xf32> to vector<8x32xf32>
    %240 = arith.mulf %238, %239 : vector<8x32xf32>
    %241 = arith.addf %237, %240 : vector<8x32xf32>
    %242 = vector.extract_strided_slice %234 {offsets = [0, 96], sizes = [8, 32], strides = [1, 1]} : vector<8x128xf32> to vector<8x32xf32>
    %243 = math.tanh %241 : vector<8x32xf32>
    %244 = arith.mulf %242, %243 : vector<8x32xf32>
    %c0_69 = arith.constant 0 : index
    %245 = arith.index_cast %225 : i32 to index
    %c0_70 = arith.constant 0 : index
    %246 = vector.load %arg9[%c0_69, %245, %c0_70] : memref<2x64x32xf32, #tpu.memory_space<vmem>>, vector<1x8x32xf32>
    %247 = vector.shape_cast %246 : vector<1x8x32xf32> to vector<8x32xf32>
    %248 = vector.shape_cast %244 : vector<8x32xf32> to vector<1x8x32xf32>
    tpu.vector_store %arg9[%c0_69, %245, %c0_70], %248 {strides = array<i32>} : memref<2x64x32xf32, #tpu.memory_space<vmem>>, vector<1x8x32xf32>,
    %c7_i32_71 = arith.constant 7 : i32
    %249 = arith.subi %c7_i32_71, %c4_i32 : i32
    %c8_i32_72 = arith.constant 8 : i32
    %250 = arith.muli %249, %c8_i32_72 : i32
    %251 = tpu.assume_multiple %250, 8 : i32
    %252 = arith.index_cast %251 : i32 to index
    %c128_73 = arith.constant 128 : index
    %253 = vector.load %arg8[%252, %c128_73] : memref<64x256xf32, #tpu.memory_space<vmem>>, vector<8x128xf32>
    %cst_74 = arith.constant dense<0.000000e+00> : vector<8x128xf32>
    %254 = tpu.matmul %219, %18, %cst_74 {dimension_numbers = #tpu.dot_dimension_numbers<[1], [0], [0], [1], [0, 0, 1, 1], [], []>} : vector<8x32xf32>, vector<32x128xf32>, vector<8x128xf32> -> vector<8x128xf32>
    %255 = arith.addf %253, %254 : vector<8x128xf32>
    %256 = arith.negf %255 : vector<8x128xf32>
    %257 = math.exp %256 : vector<8x128xf32>
    %cst_75 = arith.constant 1.000000e+00 : f32
    %258 = vector.broadcast %cst_75 : f32 to vector<8x128xf32>
    %259 = arith.addf %258, %257 : vector<8x128xf32>
    %260 = arith.divf %258, %259 : vector<8x128xf32>
    %261 = math.tanh %255 : vector<8x128xf32>
    %262 = vector.extract_strided_slice %260 {offsets = [0, 32], sizes = [8, 32], strides = [1, 1]} : vector<8x128xf32> to vector<8x32xf32>
    %263 = arith.mulf %262, %216 : vector<8x32xf32>
    %264 = vector.extract_strided_slice %260 {offsets = [0, 0], sizes = [8, 32], strides = [1, 1]} : vector<8x128xf32> to vector<8x32xf32>
    %265 = vector.extract_strided_slice %261 {offsets = [0, 64], sizes = [8, 32], strides = [1, 1]} : vector<8x128xf32> to vector<8x32xf32>
    %266 = arith.mulf %264, %265 : vector<8x32xf32>
    %267 = arith.addf %263, %266 : vector<8x32xf32>
    %268 = vector.extract_strided_slice %260 {offsets = [0, 96], sizes = [8, 32], strides = [1, 1]} : vector<8x128xf32> to vector<8x32xf32>
    %269 = math.tanh %267 : vector<8x32xf32>
    %270 = arith.mulf %268, %269 : vector<8x32xf32>
    %c1_76 = arith.constant 1 : index
    %271 = arith.index_cast %251 : i32 to index
    %c0_77 = arith.constant 0 : index
    %272 = vector.load %arg9[%c1_76, %271, %c0_77] : memref<2x64x32xf32, #tpu.memory_space<vmem>>, vector<1x8x32xf32>
    %273 = vector.shape_cast %272 : vector<1x8x32xf32> to vector<8x32xf32>
    %274 = vector.shape_cast %270 : vector<8x32xf32> to vector<1x8x32xf32>
    tpu.vector_store %arg9[%c1_76, %271, %c0_77], %274 {strides = array<i32>} : memref<2x64x32xf32, #tpu.memory_space<vmem>>, vector<1x8x32xf32>,
    %c5_i32 = arith.constant 5 : i32
    %c8_i32_78 = arith.constant 8 : i32
    %275 = arith.muli %c5_i32, %c8_i32_78 : i32
    %276 = tpu.assume_multiple %275, 8 : i32
    %277 = arith.index_cast %276 : i32 to index
    %c0_79 = arith.constant 0 : index
    %278 = vector.load %arg8[%277, %c0_79] : memref<64x256xf32, #tpu.memory_space<vmem>>, vector<8x128xf32>
    %cst_80 = arith.constant dense<0.000000e+00> : vector<8x128xf32>
    %279 = tpu.matmul %244, %16, %cst_80 {dimension_numbers = #tpu.dot_dimension_numbers<[1], [0], [0], [1], [0, 0, 1, 1], [], []>} : vector<8x32xf32>, vector<32x128xf32>, vector<8x128xf32> -> vector<8x128xf32>
    %280 = arith.addf %278, %279 : vector<8x128xf32>
    %281 = arith.negf %280 : vector<8x128xf32>
    %282 = math.exp %281 : vector<8x128xf32>
    %cst_81 = arith.constant 1.000000e+00 : f32
    %283 = vector.broadcast %cst_81 : f32 to vector<8x128xf32>
    %284 = arith.addf %283, %282 : vector<8x128xf32>
    %285 = arith.divf %283, %284 : vector<8x128xf32>
    %286 = math.tanh %280 : vector<8x128xf32>
    %287 = vector.extract_strided_slice %285 {offsets = [0, 32], sizes = [8, 32], strides = [1, 1]} : vector<8x128xf32> to vector<8x32xf32>
    %288 = arith.mulf %287, %241 : vector<8x32xf32>
    %289 = vector.extract_strided_slice %285 {offsets = [0, 0], sizes = [8, 32], strides = [1, 1]} : vector<8x128xf32> to vector<8x32xf32>
    %290 = vector.extract_strided_slice %286 {offsets = [0, 64], sizes = [8, 32], strides = [1, 1]} : vector<8x128xf32> to vector<8x32xf32>
    %291 = arith.mulf %289, %290 : vector<8x32xf32>
    %292 = arith.addf %288, %291 : vector<8x32xf32>
    %293 = vector.extract_strided_slice %285 {offsets = [0, 96], sizes = [8, 32], strides = [1, 1]} : vector<8x128xf32> to vector<8x32xf32>
    %294 = math.tanh %292 : vector<8x32xf32>
    %295 = arith.mulf %293, %294 : vector<8x32xf32>
    %c0_82 = arith.constant 0 : index
    %296 = arith.index_cast %276 : i32 to index
    %c0_83 = arith.constant 0 : index
    %297 = vector.load %arg9[%c0_82, %296, %c0_83] : memref<2x64x32xf32, #tpu.memory_space<vmem>>, vector<1x8x32xf32>
    %298 = vector.shape_cast %297 : vector<1x8x32xf32> to vector<8x32xf32>
    %299 = vector.shape_cast %295 : vector<8x32xf32> to vector<1x8x32xf32>
    tpu.vector_store %arg9[%c0_82, %296, %c0_83], %299 {strides = array<i32>} : memref<2x64x32xf32, #tpu.memory_space<vmem>>, vector<1x8x32xf32>,
    %c7_i32_84 = arith.constant 7 : i32
    %300 = arith.subi %c7_i32_84, %c5_i32 : i32
    %c8_i32_85 = arith.constant 8 : i32
    %301 = arith.muli %300, %c8_i32_85 : i32
    %302 = tpu.assume_multiple %301, 8 : i32
    %303 = arith.index_cast %302 : i32 to index
    %c128_86 = arith.constant 128 : index
    %304 = vector.load %arg8[%303, %c128_86] : memref<64x256xf32, #tpu.memory_space<vmem>>, vector<8x128xf32>
    %cst_87 = arith.constant dense<0.000000e+00> : vector<8x128xf32>
    %305 = tpu.matmul %270, %18, %cst_87 {dimension_numbers = #tpu.dot_dimension_numbers<[1], [0], [0], [1], [0, 0, 1, 1], [], []>} : vector<8x32xf32>, vector<32x128xf32>, vector<8x128xf32> -> vector<8x128xf32>
    %306 = arith.addf %304, %305 : vector<8x128xf32>
    %307 = arith.negf %306 : vector<8x128xf32>
    %308 = math.exp %307 : vector<8x128xf32>
    %cst_88 = arith.constant 1.000000e+00 : f32
    %309 = vector.broadcast %cst_88 : f32 to vector<8x128xf32>
    %310 = arith.addf %309, %308 : vector<8x128xf32>
    %311 = arith.divf %309, %310 : vector<8x128xf32>
    %312 = math.tanh %306 : vector<8x128xf32>
    %313 = vector.extract_strided_slice %311 {offsets = [0, 32], sizes = [8, 32], strides = [1, 1]} : vector<8x128xf32> to vector<8x32xf32>
    %314 = arith.mulf %313, %267 : vector<8x32xf32>
    %315 = vector.extract_strided_slice %311 {offsets = [0, 0], sizes = [8, 32], strides = [1, 1]} : vector<8x128xf32> to vector<8x32xf32>
    %316 = vector.extract_strided_slice %312 {offsets = [0, 64], sizes = [8, 32], strides = [1, 1]} : vector<8x128xf32> to vector<8x32xf32>
    %317 = arith.mulf %315, %316 : vector<8x32xf32>
    %318 = arith.addf %314, %317 : vector<8x32xf32>
    %319 = vector.extract_strided_slice %311 {offsets = [0, 96], sizes = [8, 32], strides = [1, 1]} : vector<8x128xf32> to vector<8x32xf32>
    %320 = math.tanh %318 : vector<8x32xf32>
    %321 = arith.mulf %319, %320 : vector<8x32xf32>
    %c1_89 = arith.constant 1 : index
    %322 = arith.index_cast %302 : i32 to index
    %c0_90 = arith.constant 0 : index
    %323 = vector.load %arg9[%c1_89, %322, %c0_90] : memref<2x64x32xf32, #tpu.memory_space<vmem>>, vector<1x8x32xf32>
    %324 = vector.shape_cast %323 : vector<1x8x32xf32> to vector<8x32xf32>
    %325 = vector.shape_cast %321 : vector<8x32xf32> to vector<1x8x32xf32>
    tpu.vector_store %arg9[%c1_89, %322, %c0_90], %325 {strides = array<i32>} : memref<2x64x32xf32, #tpu.memory_space<vmem>>, vector<1x8x32xf32>,
    %c6_i32 = arith.constant 6 : i32
    %c8_i32_91 = arith.constant 8 : i32
    %326 = arith.muli %c6_i32, %c8_i32_91 : i32
    %327 = tpu.assume_multiple %326, 8 : i32
    %328 = arith.index_cast %327 : i32 to index
    %c0_92 = arith.constant 0 : index
    %329 = vector.load %arg8[%328, %c0_92] : memref<64x256xf32, #tpu.memory_space<vmem>>, vector<8x128xf32>
    %cst_93 = arith.constant dense<0.000000e+00> : vector<8x128xf32>
    %330 = tpu.matmul %295, %16, %cst_93 {dimension_numbers = #tpu.dot_dimension_numbers<[1], [0], [0], [1], [0, 0, 1, 1], [], []>} : vector<8x32xf32>, vector<32x128xf32>, vector<8x128xf32> -> vector<8x128xf32>
    %331 = arith.addf %329, %330 : vector<8x128xf32>
    %332 = arith.negf %331 : vector<8x128xf32>
    %333 = math.exp %332 : vector<8x128xf32>
    %cst_94 = arith.constant 1.000000e+00 : f32
    %334 = vector.broadcast %cst_94 : f32 to vector<8x128xf32>
    %335 = arith.addf %334, %333 : vector<8x128xf32>
    %336 = arith.divf %334, %335 : vector<8x128xf32>
    %337 = math.tanh %331 : vector<8x128xf32>
    %338 = vector.extract_strided_slice %336 {offsets = [0, 32], sizes = [8, 32], strides = [1, 1]} : vector<8x128xf32> to vector<8x32xf32>
    %339 = arith.mulf %338, %292 : vector<8x32xf32>
    %340 = vector.extract_strided_slice %336 {offsets = [0, 0], sizes = [8, 32], strides = [1, 1]} : vector<8x128xf32> to vector<8x32xf32>
    %341 = vector.extract_strided_slice %337 {offsets = [0, 64], sizes = [8, 32], strides = [1, 1]} : vector<8x128xf32> to vector<8x32xf32>
    %342 = arith.mulf %340, %341 : vector<8x32xf32>
    %343 = arith.addf %339, %342 : vector<8x32xf32>
    %344 = vector.extract_strided_slice %336 {offsets = [0, 96], sizes = [8, 32], strides = [1, 1]} : vector<8x128xf32> to vector<8x32xf32>
    %345 = math.tanh %343 : vector<8x32xf32>
    %346 = arith.mulf %344, %345 : vector<8x32xf32>
    %c0_95 = arith.constant 0 : index
    %347 = arith.index_cast %327 : i32 to index
    %c0_96 = arith.constant 0 : index
    %348 = vector.load %arg9[%c0_95, %347, %c0_96] : memref<2x64x32xf32, #tpu.memory_space<vmem>>, vector<1x8x32xf32>
    %349 = vector.shape_cast %348 : vector<1x8x32xf32> to vector<8x32xf32>
    %350 = vector.shape_cast %346 : vector<8x32xf32> to vector<1x8x32xf32>
    tpu.vector_store %arg9[%c0_95, %347, %c0_96], %350 {strides = array<i32>} : memref<2x64x32xf32, #tpu.memory_space<vmem>>, vector<1x8x32xf32>,
    %c7_i32_97 = arith.constant 7 : i32
    %351 = arith.subi %c7_i32_97, %c6_i32 : i32
    %c8_i32_98 = arith.constant 8 : i32
    %352 = arith.muli %351, %c8_i32_98 : i32
    %353 = tpu.assume_multiple %352, 8 : i32
    %354 = arith.index_cast %353 : i32 to index
    %c128_99 = arith.constant 128 : index
    %355 = vector.load %arg8[%354, %c128_99] : memref<64x256xf32, #tpu.memory_space<vmem>>, vector<8x128xf32>
    %cst_100 = arith.constant dense<0.000000e+00> : vector<8x128xf32>
    %356 = tpu.matmul %321, %18, %cst_100 {dimension_numbers = #tpu.dot_dimension_numbers<[1], [0], [0], [1], [0, 0, 1, 1], [], []>} : vector<8x32xf32>, vector<32x128xf32>, vector<8x128xf32> -> vector<8x128xf32>
    %357 = arith.addf %355, %356 : vector<8x128xf32>
    %358 = arith.negf %357 : vector<8x128xf32>
    %359 = math.exp %358 : vector<8x128xf32>
    %cst_101 = arith.constant 1.000000e+00 : f32
    %360 = vector.broadcast %cst_101 : f32 to vector<8x128xf32>
    %361 = arith.addf %360, %359 : vector<8x128xf32>
    %362 = arith.divf %360, %361 : vector<8x128xf32>
    %363 = math.tanh %357 : vector<8x128xf32>
    %364 = vector.extract_strided_slice %362 {offsets = [0, 32], sizes = [8, 32], strides = [1, 1]} : vector<8x128xf32> to vector<8x32xf32>
    %365 = arith.mulf %364, %318 : vector<8x32xf32>
    %366 = vector.extract_strided_slice %362 {offsets = [0, 0], sizes = [8, 32], strides = [1, 1]} : vector<8x128xf32> to vector<8x32xf32>
    %367 = vector.extract_strided_slice %363 {offsets = [0, 64], sizes = [8, 32], strides = [1, 1]} : vector<8x128xf32> to vector<8x32xf32>
    %368 = arith.mulf %366, %367 : vector<8x32xf32>
    %369 = arith.addf %365, %368 : vector<8x32xf32>
    %370 = vector.extract_strided_slice %362 {offsets = [0, 96], sizes = [8, 32], strides = [1, 1]} : vector<8x128xf32> to vector<8x32xf32>
    %371 = math.tanh %369 : vector<8x32xf32>
    %372 = arith.mulf %370, %371 : vector<8x32xf32>
    %c1_102 = arith.constant 1 : index
    %373 = arith.index_cast %353 : i32 to index
    %c0_103 = arith.constant 0 : index
    %374 = vector.load %arg9[%c1_102, %373, %c0_103] : memref<2x64x32xf32, #tpu.memory_space<vmem>>, vector<1x8x32xf32>
    %375 = vector.shape_cast %374 : vector<1x8x32xf32> to vector<8x32xf32>
    %376 = vector.shape_cast %372 : vector<8x32xf32> to vector<1x8x32xf32>
    tpu.vector_store %arg9[%c1_102, %373, %c0_103], %376 {strides = array<i32>} : memref<2x64x32xf32, #tpu.memory_space<vmem>>, vector<1x8x32xf32>,
    %c7_i32_104 = arith.constant 7 : i32
    %c8_i32_105 = arith.constant 8 : i32
    %377 = arith.muli %c7_i32_104, %c8_i32_105 : i32
    %378 = tpu.assume_multiple %377, 8 : i32
    %379 = arith.index_cast %378 : i32 to index
    %c0_106 = arith.constant 0 : index
    %380 = vector.load %arg8[%379, %c0_106] : memref<64x256xf32, #tpu.memory_space<vmem>>, vector<8x128xf32>
    %cst_107 = arith.constant dense<0.000000e+00> : vector<8x128xf32>
    %381 = tpu.matmul %346, %16, %cst_107 {dimension_numbers = #tpu.dot_dimension_numbers<[1], [0], [0], [1], [0, 0, 1, 1], [], []>} : vector<8x32xf32>, vector<32x128xf32>, vector<8x128xf32> -> vector<8x128xf32>
    %382 = arith.addf %380, %381 : vector<8x128xf32>
    %383 = arith.negf %382 : vector<8x128xf32>
    %384 = math.exp %383 : vector<8x128xf32>
    %cst_108 = arith.constant 1.000000e+00 : f32
    %385 = vector.broadcast %cst_108 : f32 to vector<8x128xf32>
    %386 = arith.addf %385, %384 : vector<8x128xf32>
    %387 = arith.divf %385, %386 : vector<8x128xf32>
    %388 = math.tanh %382 : vector<8x128xf32>
    %389 = vector.extract_strided_slice %387 {offsets = [0, 32], sizes = [8, 32], strides = [1, 1]} : vector<8x128xf32> to vector<8x32xf32>
    %390 = arith.mulf %389, %343 : vector<8x32xf32>
    %391 = vector.extract_strided_slice %387 {offsets = [0, 0], sizes = [8, 32], strides = [1, 1]} : vector<8x128xf32> to vector<8x32xf32>
    %392 = vector.extract_strided_slice %388 {offsets = [0, 64], sizes = [8, 32], strides = [1, 1]} : vector<8x128xf32> to vector<8x32xf32>
    %393 = arith.mulf %391, %392 : vector<8x32xf32>
    %394 = arith.addf %390, %393 : vector<8x32xf32>
    %395 = vector.extract_strided_slice %387 {offsets = [0, 96], sizes = [8, 32], strides = [1, 1]} : vector<8x128xf32> to vector<8x32xf32>
    %396 = math.tanh %394 : vector<8x32xf32>
    %397 = arith.mulf %395, %396 : vector<8x32xf32>
    %c0_109 = arith.constant 0 : index
    %398 = arith.index_cast %378 : i32 to index
    %c0_110 = arith.constant 0 : index
    %399 = vector.load %arg9[%c0_109, %398, %c0_110] : memref<2x64x32xf32, #tpu.memory_space<vmem>>, vector<1x8x32xf32>
    %400 = vector.shape_cast %399 : vector<1x8x32xf32> to vector<8x32xf32>
    %401 = vector.shape_cast %397 : vector<8x32xf32> to vector<1x8x32xf32>
    tpu.vector_store %arg9[%c0_109, %398, %c0_110], %401 {strides = array<i32>} : memref<2x64x32xf32, #tpu.memory_space<vmem>>, vector<1x8x32xf32>,
    %c7_i32_111 = arith.constant 7 : i32
    %402 = arith.subi %c7_i32_111, %c7_i32_104 : i32
    %c8_i32_112 = arith.constant 8 : i32
    %403 = arith.muli %402, %c8_i32_112 : i32
    %404 = tpu.assume_multiple %403, 8 : i32
    %405 = arith.index_cast %404 : i32 to index
    %c128_113 = arith.constant 128 : index
    %406 = vector.load %arg8[%405, %c128_113] : memref<64x256xf32, #tpu.memory_space<vmem>>, vector<8x128xf32>
    %cst_114 = arith.constant dense<0.000000e+00> : vector<8x128xf32>
    %407 = tpu.matmul %372, %18, %cst_114 {dimension_numbers = #tpu.dot_dimension_numbers<[1], [0], [0], [1], [0, 0, 1, 1], [], []>} : vector<8x32xf32>, vector<32x128xf32>, vector<8x128xf32> -> vector<8x128xf32>
    %408 = arith.addf %406, %407 : vector<8x128xf32>
    %409 = arith.negf %408 : vector<8x128xf32>
    %410 = math.exp %409 : vector<8x128xf32>
    %cst_115 = arith.constant 1.000000e+00 : f32
    %411 = vector.broadcast %cst_115 : f32 to vector<8x128xf32>
    %412 = arith.addf %411, %410 : vector<8x128xf32>
    %413 = arith.divf %411, %412 : vector<8x128xf32>
    %414 = math.tanh %408 : vector<8x128xf32>
    %415 = vector.extract_strided_slice %413 {offsets = [0, 32], sizes = [8, 32], strides = [1, 1]} : vector<8x128xf32> to vector<8x32xf32>
    %416 = arith.mulf %415, %369 : vector<8x32xf32>
    %417 = vector.extract_strided_slice %413 {offsets = [0, 0], sizes = [8, 32], strides = [1, 1]} : vector<8x128xf32> to vector<8x32xf32>
    %418 = vector.extract_strided_slice %414 {offsets = [0, 64], sizes = [8, 32], strides = [1, 1]} : vector<8x128xf32> to vector<8x32xf32>
    %419 = arith.mulf %417, %418 : vector<8x32xf32>
    %420 = arith.addf %416, %419 : vector<8x32xf32>
    %421 = vector.extract_strided_slice %413 {offsets = [0, 96], sizes = [8, 32], strides = [1, 1]} : vector<8x128xf32> to vector<8x32xf32>
    %422 = math.tanh %420 : vector<8x32xf32>
    %423 = arith.mulf %421, %422 : vector<8x32xf32>
    %c1_116 = arith.constant 1 : index
    %424 = arith.index_cast %404 : i32 to index
    %c0_117 = arith.constant 0 : index
    %425 = vector.load %arg9[%c1_116, %424, %c0_117] : memref<2x64x32xf32, #tpu.memory_space<vmem>>, vector<1x8x32xf32>
    %426 = vector.shape_cast %425 : vector<1x8x32xf32> to vector<8x32xf32>
    %427 = vector.shape_cast %423 : vector<8x32xf32> to vector<1x8x32xf32>
    tpu.vector_store %arg9[%c1_116, %424, %c0_117], %427 {strides = array<i32>} : memref<2x64x32xf32, #tpu.memory_space<vmem>>, vector<1x8x32xf32>,
    %c8_i32_118 = arith.constant 8 : i32
    %c0_119 = arith.constant 0 : index
    %c0_120 = arith.constant 0 : index
    %c0_121 = arith.constant 0 : index
    %428 = vector.load %arg9[%c0_119, %c0_120, %c0_121] : memref<2x64x32xf32, #tpu.memory_space<vmem>>, vector<1x64x32xf32>
    %429 = vector.shape_cast %428 : vector<1x64x32xf32> to vector<64x32xf32>
    %c0_122 = arith.constant 0 : index
    %c0_123 = arith.constant 0 : index
    %c0_124 = arith.constant 0 : index
    %430 = vector.load %arg5[%c0_122, %c0_123, %c0_124] : memref<2x32x8xf32, #tpu.memory_space<vmem>>, vector<1x32x8xf32>
    %431 = vector.shape_cast %430 : vector<1x32x8xf32> to vector<32x8xf32>
    %cst_125 = arith.constant dense<0.000000e+00> : vector<64x8xf32>
    %432 = tpu.matmul %429, %431, %cst_125 {dimension_numbers = #tpu.dot_dimension_numbers<[1], [0], [0], [1], [0, 0, 1, 1], [], []>} : vector<64x32xf32>, vector<32x8xf32>, vector<64x8xf32> -> vector<64x8xf32>
    %c1_126 = arith.constant 1 : index
    %c0_127 = arith.constant 0 : index
    %c0_128 = arith.constant 0 : index
    %433 = vector.load %arg9[%c1_126, %c0_127, %c0_128] : memref<2x64x32xf32, #tpu.memory_space<vmem>>, vector<1x64x32xf32>
    %434 = vector.shape_cast %433 : vector<1x64x32xf32> to vector<64x32xf32>
    %c1_129 = arith.constant 1 : index
    %c0_130 = arith.constant 0 : index
    %c0_131 = arith.constant 0 : index
    %435 = vector.load %arg5[%c1_129, %c0_130, %c0_131] : memref<2x32x8xf32, #tpu.memory_space<vmem>>, vector<1x32x8xf32>
    %436 = vector.shape_cast %435 : vector<1x32x8xf32> to vector<32x8xf32>
    %cst_132 = arith.constant dense<0.000000e+00> : vector<64x8xf32>
    %437 = tpu.matmul %434, %436, %cst_132 {dimension_numbers = #tpu.dot_dimension_numbers<[1], [0], [0], [1], [0, 0, 1, 1], [], []>} : vector<64x32xf32>, vector<32x8xf32>, vector<64x8xf32> -> vector<64x8xf32>
    %438 = arith.addf %432, %437 : vector<64x8xf32>
    %c0_133 = arith.constant 0 : index
    %c0_134 = arith.constant 0 : index
    %439 = vector.load %arg6[%c0_133, %c0_134] : memref<1x8xf32, #tpu.memory_space<vmem>>, vector<1x8xf32>
    %440 = vector.shape_cast %439 : vector<1x8xf32> to vector<1x8xf32>
    %441 = vector.broadcast %440 : vector<1x8xf32> to vector<64x8xf32>
    %442 = arith.addf %438, %441 : vector<64x8xf32>
    %c0_135 = arith.constant 0 : index
    %c0_136 = arith.constant 0 : index
    %443 = vector.load %arg7[%c0_135, %c0_136] : memref<64x8xf32, #tpu.memory_space<vmem>>, vector<64x8xf32>
    tpu.vector_store %arg7[%c0_135, %c0_136], %442 {strides = array<i32>} : memref<64x8xf32, #tpu.memory_space<vmem>>, vector<64x8xf32>,
    return
  }
}

</mosaic_0001>

<llo_original>
// kernel: tpu_custom_call.1
$region0: #{tpu_custom_call.1}
  #allocation0 [shape = 'u32[]', space=smem, size = 0x4, offset = 0x4, fixed_abs, tag = 'smem constant byte address 0x4 - core index']
  #allocation1 [shape = 'u32[72,128]{1,0:T(1,128)}', space=vmem, size = 0x9000, scoped, tag = 'internal scratch']
  #allocation2 [shape = 'f32[64,256]{1,0:T(8,128)}', space=vmem, size = 0x10000, scoped, tag = 'scratch operand']
  #allocation3 [shape = 'f32[2,64,32]{2,1,0:T(8,128)}', space=vmem, size = 0x10000, scoped, tag = 'scratch operand']
  %s0 = inlined_call_operand.vmem [shape: s32[64,1], index: 0, kind: input, shape index: {}]
  %s1 = inlined_call_operand.vmem [shape: f32[32,16], index: 1, kind: input, shape index: {}]
  %s2 = inlined_call_operand.vmem [shape: f32[16,256], index: 2, kind: input, shape index: {}]
  %s3 = inlined_call_operand.vmem [shape: f32[2,32,128], index: 3, kind: input, shape index: {}]
  %s4 = inlined_call_operand.vmem [shape: f32[1,256], index: 4, kind: input, shape index: {}]
  %s5 = inlined_call_operand.vmem [shape: f32[2,32,8], index: 5, kind: input, shape index: {}]
  %s6 = inlined_call_operand.vmem [shape: f32[1,8], index: 6, kind: input, shape index: {}]
  %s7 = inlined_call_operand.vmem [shape: f32[64,8], index: 7, kind: output, shape index: {}]
  %s8 = sld [smem:[#allocation0]]
  $region38: #{tpu_custom_call.1} parent=0
    _
  %s10 = ssub.s32 1, %s8
  %s11 = scalar_select 0, %s10, %s8
  // Predicated region
  $region2: #{tpu_custom_call.1} parent=0 // pred_check
    _
  $region3: #{tpu_custom_call.1} parent=0 // pred_check_branch
    %13 = sbr.rel (0) target = $region5
  $region4: #{tpu_custom_call.1} parent=0 // pred_region
    _
  $region5: #{tpu_custom_call.1} parent=0 // pred_fallthru
    _
  // Predicated region
  $region6: #{tpu_custom_call.1} parent=0 // pred_check
    _
  $region7: #{tpu_custom_call.1} parent=0 // pred_check_branch
    %15 = sbr.rel (0) target = $region9
  $region8: #{tpu_custom_call.1} parent=0 // pred_region
    _
  $region9: #{tpu_custom_call.1} parent=0 // pred_fallthru
    _
  // Predicated region
  $region10: #{tpu_custom_call.1} parent=0 // pred_check
    _
  $region11: #{tpu_custom_call.1} parent=0 // pred_check_branch
    %17 = sbr.rel (0) target = $region13
  $region12: #{tpu_custom_call.1} parent=0 // pred_region
    _
  $region13: #{tpu_custom_call.1} parent=0 // pred_fallthru
    _
  // Predicated region
  $region14: #{tpu_custom_call.1} parent=0 // pred_check
    _
  $region15: #{tpu_custom_call.1} parent=0 // pred_check_branch
    %19 = sbr.rel (0) target = $region17
  $region16: #{tpu_custom_call.1} parent=0 // pred_region
    _
  $region17: #{tpu_custom_call.1} parent=0 // pred_fallthru
    _
  // Predicated region
  $region18: #{tpu_custom_call.1} parent=0 // pred_check
    _
  $region19: #{tpu_custom_call.1} parent=0 // pred_check_branch
    %21 = sbr.rel (0) target = $region21
  $region20: #{tpu_custom_call.1} parent=0 // pred_region
    _
  $region21: #{tpu_custom_call.1} parent=0 // pred_fallthru
    _
  // Predicated region
  $region22: #{tpu_custom_call.1} parent=0 // pred_check
    _
  $region23: #{tpu_custom_call.1} parent=0 // pred_check_branch
    %23 = sbr.rel (0) target = $region25
  $region24: #{tpu_custom_call.1} parent=0 // pred_region
    _
  $region25: #{tpu_custom_call.1} parent=0 // pred_fallthru
    _
  // Predicated region
  $region26: #{tpu_custom_call.1} parent=0 // pred_check
    _
  $region27: #{tpu_custom_call.1} parent=0 // pred_check_branch
    %25 = sbr.rel (0) target = $region29
  $region28: #{tpu_custom_call.1} parent=0 // pred_region
    _
  $region29: #{tpu_custom_call.1} parent=0 // pred_fallthru
    _
  %v26 = vld [vmem:[%s0] sm:$0xff]
  %v27 = vld [vmem:[%s0 + $0x8] sm:$0xff]
  %v28 = vld [vmem:[%s0 + $0x10] sm:$0xff]
  %v29 = vld [vmem:[%s0 + $0x18] sm:$0xff]
  %v30 = vld [vmem:[%s0 + $0x20] sm:$0xff]
  %v31 = vld [vmem:[%s0 + $0x28] sm:$0xff]
  %v32 = vld [vmem:[%s0 + $0x30] sm:$0xff]
  %v33 = vld [vmem:[%s0 + $0x38] sm:$0xff]
  %v34 = vlaneseq
  %v35 = vand.u32 %v34, 127
  %36 = vset.pattern.permute.xlu0 0
  %37 = vperm.xlu0 %36, %v26
  %v38 = vpop.permute.xlu0 %37
  %39 = vset.pattern.permute.xlu0 0
  %40 = vperm.xlu0 %39, %v27
  %v41 = vpop.permute.xlu0 %40
  %42 = vset.pattern.permute.xlu0 0
  %43 = vperm.xlu0 %42, %v28
  %v44 = vpop.permute.xlu0 %43
  %45 = vset.pattern.permute.xlu0 0
  %46 = vperm.xlu0 %45, %v29
  %v47 = vpop.permute.xlu0 %46
  %48 = vset.pattern.permute.xlu0 0
  %49 = vperm.xlu0 %48, %v30
  %v50 = vpop.permute.xlu0 %49
  %51 = vset.pattern.permute.xlu0 0
  %52 = vperm.xlu0 %51, %v31
  %v53 = vpop.permute.xlu0 %52
  %54 = vset.pattern.permute.xlu0 0
  %55 = vperm.xlu0 %54, %v32
  %v56 = vpop.permute.xlu0 %55
  %57 = vset.pattern.permute.xlu0 0
  %58 = vperm.xlu0 %57, %v33
  %v59 = vpop.permute.xlu0 %58
  %vm60 = vcmp.eq.s32.totalorder %v38, %v35
  %vm61 = vcmp.eq.s32.totalorder %v41, %v35
  %vm62 = vcmp.eq.s32.totalorder %v44, %v35
  %vm63 = vcmp.eq.s32.totalorder %v47, %v35
  %vm64 = vcmp.eq.s32.totalorder %v50, %v35
  %vm65 = vcmp.eq.s32.totalorder %v53, %v35
  %vm66 = vcmp.eq.s32.totalorder %v56, %v35
  %vm67 = vcmp.eq.s32.totalorder %v59, %v35
  %v68 = vsel %vm60, 1, 0
  %v69 = vsel %vm61, 1, 0
  %v70 = vsel %vm62, 1, 0
  %v71 = vsel %vm63, 1, 0
  %v72 = vsel %vm64, 1, 0
  %v73 = vsel %vm65, 1, 0
  %v74 = vsel %vm66, 1, 0
  %v75 = vsel %vm67, 1, 0
  %v76 = vcvt.s32.f32 %v68
  %v77 = vcvt.s32.f32 %v69
  %v78 = vcvt.s32.f32 %v70
  %v79 = vcvt.s32.f32 %v71
  %v80 = vcvt.s32.f32 %v72
  %v81 = vcvt.s32.f32 %v73
  %v82 = vcvt.s32.f32 %v74
  %v83 = vcvt.s32.f32 %v75
  %v84 = vld [vmem:[%s1] sm:$0xff]
  %v85 = vld [vmem:[%s1 + $0x8] sm:$0xff]
  %v86 = vld [vmem:[%s1 + $0x10] sm:$0xff]
  %v87 = vld [vmem:[%s1 + $0x18] sm:$0xff]
  %vm88 = vcmask 261120
  %v90 = vsel %vm88, %v76, 0
  %v93 = vsel %vm88, %v77, 0
  %v96 = vsel %vm88, %v78, 0
  %v99 = vsel %vm88, %v79, 0
  %v102 = vsel %vm88, %v80, 0
  %v105 = vsel %vm88, %v81, 0
  %v108 = vsel %vm88, %v82, 0
  %v111 = vsel %vm88, %v83, 0
  %113 = vmatpush.msra.mxu0 0.0
  %114 = vmatpush.msra.mxu0 0.0
  %115 = vmatpush.msra.mxu0 0.0
  %116 = vmatpush.msra.mxu0 0.0
  %117 = vmatpush.msra.mxu0 0.0
  %118 = vmatpush.msra.mxu0 0.0
  %119 = vmatpush.msra.mxu0 0.0
  %120 = vmatpush.msra.mxu0 0.0
  %121 = vmatpush.msra.mxu0 0.0
  %122 = vmatpush.msra.mxu0 0.0
  %123 = vmatpush.msra.mxu0 0.0
  %124 = vmatpush.msra.mxu0 0.0
  %125 = vmatpush.msra.mxu0 %v87
  %126 = vmatpush.msra.mxu0 %v86
  %127 = vmatpush.msra.mxu0 %v85
  %128 = vmatpush.msra.mxu0 %v84
  %129 = vmatmul.f32.gmra.mxu0 %v90
  %v130 = vpop.f32.mrf.mxu0
  %v131 = vadd.f32 0.0, %v130
  %132 = vmatmul.f32.gmra.mxu0 %v93
  %v133 = vpop.f32.mrf.mxu0
  %v134 = vadd.f32 0.0, %v133
  %135 = vmatmul.f32.gmra.mxu0 %v96
  %v136 = vpop.f32.mrf.mxu0
  %v137 = vadd.f32 0.0, %v136
  %138 = vmatmul.f32.gmra.mxu0 %v99
  %v139 = vpop.f32.mrf.mxu0
  %v140 = vadd.f32 0.0, %v139
  %141 = vmatmul.f32.gmra.mxu0 %v102
  %v142 = vpop.f32.mrf.mxu0
  %v143 = vadd.f32 0.0, %v142
  %144 = vmatmul.f32.gmra.mxu0 %v105
  %v145 = vpop.f32.mrf.mxu0
  %v146 = vadd.f32 0.0, %v145
  %147 = vmatmul.f32.gmra.mxu0 %v108
  %v148 = vpop.f32.mrf.mxu0
  %v149 = vadd.f32 0.0, %v148
  %150 = vmatmul.f32.gmra.mxu0 %v111
  %v151 = vpop.f32.mrf.mxu0
  %v152 = vadd.f32 0.0, %v151
  %153 = vdwg.mxu0
  %v154 = vld [vmem:[%s2] sm:$0xff]
  %v155 = vld [vmem:[%s2 + $0x8] sm:$0xff]
  %v156 = vld [vmem:[%s2 + $0x10] sm:$0xff]
  %v157 = vld [vmem:[%s2 + $0x18] sm:$0xff]
  %v158 = vld [vmem:[%s4] sm:$0x3]
  %v160 = vperm.slane %v158, 0
  %v161 = vperm.slane %v158, 1
  %vm164 = vcmask 130048
  %v166 = vsel %vm164, %v131, 0
  %v169 = vsel %vm164, %v134, 0
  %v172 = vsel %vm164, %v137, 0
  %v175 = vsel %vm164, %v140, 0
  %v178 = vsel %vm164, %v143, 0
  %v181 = vsel %vm164, %v146, 0
  %v184 = vsel %vm164, %v149, 0
  %v187 = vsel %vm164, %v152, 0
  %189 = vmatpush.msra.mxu0 0.0
  %190 = vmatpush.msra.mxu0 0.0
  %191 = vmatpush.msra.mxu0 0.0
  %192 = vmatpush.msra.mxu0 0.0
  %193 = vmatpush.msra.mxu0 0.0
  %194 = vmatpush.msra.mxu0 0.0
  %195 = vmatpush.msra.mxu0 0.0
  %196 = vmatpush.msra.mxu0 0.0
  %197 = vmatpush.msra.mxu0 0.0
  %198 = vmatpush.msra.mxu0 0.0
  %199 = vmatpush.msra.mxu0 0.0
  %200 = vmatpush.msra.mxu0 0.0
  %201 = vmatpush.msra.mxu0 0.0
  %202 = vmatpush.msra.mxu0 0.0
  %203 = vmatpush.msra.mxu0 %v156
  %204 = vmatpush.msra.mxu0 %v154
  %205 = vmatmul.f32.gmra.mxu0 %v166
  %v206 = vpop.f32.mrf.mxu0
  %v207 = vadd.f32 %v160, %v206
  %208 = vmatmul.f32.gmra.mxu0 %v169
  %v209 = vpop.f32.mrf.mxu0
  %v210 = vadd.f32 %v160, %v209
  %211 = vmatmul.f32.gmra.mxu0 %v172
  %v212 = vpop.f32.mrf.mxu0
  %v213 = vadd.f32 %v160, %v212
  %214 = vmatmul.f32.gmra.mxu0 %v175
  %v215 = vpop.f32.mrf.mxu0
  %v216 = vadd.f32 %v160, %v215
  %217 = vmatmul.f32.gmra.mxu0 %v178
  %v218 = vpop.f32.mrf.mxu0
  %v219 = vadd.f32 %v160, %v218
  %220 = vmatmul.f32.gmra.mxu0 %v181
  %v221 = vpop.f32.mrf.mxu0
  %v222 = vadd.f32 %v160, %v221
  %223 = vmatmul.f32.gmra.mxu0 %v184
  %v224 = vpop.f32.mrf.mxu0
  %v225 = vadd.f32 %v160, %v224
  %226 = vmatmul.f32.gmra.mxu0 %v187
  %v227 = vpop.f32.mrf.mxu0
  %v228 = vadd.f32 %v160, %v227
  %229 = vdwg.mxu0
  %230 = vmatpush.msra.mxu0 0.0
  %231 = vmatpush.msra.mxu0 0.0
  %232 = vmatpush.msra.mxu0 0.0
  %233 = vmatpush.msra.mxu0 0.0
  %234 = vmatpush.msra.mxu0 0.0
  %235 = vmatpush.msra.mxu0 0.0
  %236 = vmatpush.msra.mxu0 0.0
  %237 = vmatpush.msra.mxu0 0.0
  %238 = vmatpush.msra.mxu0 0.0
  %239 = vmatpush.msra.mxu0 0.0
  %240 = vmatpush.msra.mxu0 0.0
  %241 = vmatpush.msra.mxu0 0.0
  %242 = vmatpush.msra.mxu0 0.0
  %243 = vmatpush.msra.mxu0 0.0
  %244 = vmatpush.msra.mxu0 %v157
  %245 = vmatpush.msra.mxu0 %v155
  %246 = vmatmul.f32.gmra.mxu0 %v166
  %v247 = vpop.f32.mrf.mxu0
  %v248 = vadd.f32 %v161, %v247
  %249 = vmatmul.f32.gmra.mxu0 %v169
  %v250 = vpop.f32.mrf.mxu0
  %v251 = vadd.f32 %v161, %v250
  %252 = vmatmul.f32.gmra.mxu0 %v172
  %v253 = vpop.f32.mrf.mxu0
  %v254 = vadd.f32 %v161, %v253
  %255 = vmatmul.f32.gmra.mxu0 %v175
  %v256 = vpop.f32.mrf.mxu0
  %v257 = vadd.f32 %v161, %v256
  %258 = vmatmul.f32.gmra.mxu0 %v178
  %v259 = vpop.f32.mrf.mxu0
  %v260 = vadd.f32 %v161, %v259
  %261 = vmatmul.f32.gmra.mxu0 %v181
  %v262 = vpop.f32.mrf.mxu0
  %v263 = vadd.f32 %v161, %v262
  %264 = vmatmul.f32.gmra.mxu0 %v184
  %v265 = vpop.f32.mrf.mxu0
  %v266 = vadd.f32 %v161, %v265
  %267 = vmatmul.f32.gmra.mxu0 %v187
  %v268 = vpop.f32.mrf.mxu0
  %v269 = vadd.f32 %v161, %v268
  %270 = vdwg.mxu0
  %271 = vst [vmem:[#allocation2] sm:$0xff] %v207
  %272 = vst [vmem:[#allocation2 + $0x8] sm:$0xff] %v248
  %273 = vst [vmem:[#allocation2 + $0x10] sm:$0xff] %v210
  %274 = vst [vmem:[#allocation2 + $0x18] sm:$0xff] %v251
  %275 = vst [vmem:[#allocation2 + $0x20] sm:$0xff] %v213
  %276 = vst [vmem:[#allocation2 + $0x28] sm:$0xff] %v254
  %277 = vst [vmem:[#allocation2 + $0x30] sm:$0xff] %v216
  %278 = vst [vmem:[#allocation2 + $0x38] sm:$0xff] %v257
  %279 = vst [vmem:[#allocation2 + $0x40] sm:$0xff] %v219
  %280 = vst [vmem:[#allocation2 + $0x48] sm:$0xff] %v260
  %281 = vst [vmem:[#allocation2 + $0x50] sm:$0xff] %v222
  %282 = vst [vmem:[#allocation2 + $0x58] sm:$0xff] %v263
  %283 = vst [vmem:[#allocation2 + $0x60] sm:$0xff] %v225
  %284 = vst [vmem:[#allocation2 + $0x68] sm:$0xff] %v266
  %285 = vst [vmem:[#allocation2 + $0x70] sm:$0xff] %v228
  %286 = vst [vmem:[#allocation2 + $0x78] sm:$0xff] %v269
  %v287 = vld [vmem:[%s3] sm:$0xff]
  %v288 = vld [vmem:[%s3 + $0x8] sm:$0xff]
  %v289 = vld [vmem:[%s3 + $0x10] sm:$0xff]
  %v290 = vld [vmem:[%s3 + $0x18] sm:$0xff]
  %s291 = scalar_lea.vmem %s3, 32
  %v292 = vld [vmem:[%s291] sm:$0xff]
  %v293 = vld [vmem:[%s291 + $0x8] sm:$0xff]
  %v294 = vld [vmem:[%s291 + $0x10] sm:$0xff]
  %v295 = vld [vmem:[%s291 + $0x18] sm:$0xff]
  %s296 = smul.u32 0, 2
  %s297 = smul.addr %s296, 8
  %s298 = scalar_lea.vmem [#allocation2], %s297
  %v299 = vld [vmem:[%s298] sm:$0xff]
  %v301 = vsel %vm88, 0.0, 0
  %303 = vmatpush.msra.mxu0 0.0
  %304 = vmatpush.msra.mxu0 0.0
  %305 = vmatpush.msra.mxu0 0.0
  %306 = vmatpush.msra.mxu0 0.0
  %307 = vmatpush.msra.mxu0 0.0
  %308 = vmatpush.msra.mxu0 0.0
  %309 = vmatpush.msra.mxu0 0.0
  %310 = vmatpush.msra.mxu0 0.0
  %311 = vmatpush.msra.mxu0 0.0
  %312 = vmatpush.msra.mxu0 0.0
  %313 = vmatpush.msra.mxu0 0.0
  %314 = vmatpush.msra.mxu0 0.0
  %315 = vmatpush.msra.mxu0 %v290
  %316 = vmatpush.msra.mxu0 %v289
  %317 = vmatpush.msra.mxu0 %v288
  %318 = vmatpush.msra.mxu0 %v287
  %319 = vmatmul.f32.gmra.mxu0 %v301
  %v320 = vpop.f32.mrf.mxu0
  %v321 = vadd.f32 0.0, %v320
  %322 = vdwg.mxu0
  %v323 = vadd.f32 %v299, %v321
  %v324 = vxor.u32 %v323, 2147483648
  %v325 = vmul.f32 %v324, 1.442695
  %v326 = vpow.pop %v325
  %v327 = vadd.f32 %v326, 1.0
  %v328 = vrcp.pop %v327
  %v329 = vmul.f32 %v327, %v328
  %v330 = vsub.f32 1.0, %v329
  %v331 = vmul.f32 %v328, %v330
  %v332 = vadd.f32 %v328, %v331
  %vm333 = vweird.f32 %v327
  %vm334 = vweird.f32 %v328
  %vm335 = vmor %vm333, %vm334
  %v336 = vsel %vm335, %v328, %v332
  %v337 = vand.u32 2147483647, %v327
  %vm338 = vcmp.eq.f32.partialorder %v337, 8.507059e+37
  %v339 = vand.u32 %v327, 2147483648
  %v340 = vor.u32 1.1754944e-38, %v339
  %v341 = vsel %vm338, %v340, %v336
  %v342 = vmul.f32 1.0, %v341
  %v343 = vtanh.pop %v323
  %v344 = vmul.f32 %v342, 0.0
  %346 = vrot.lane.b32.xlu0 %v343, 64
  %v347 = vpop.permute.xlu0 %346
  %v349 = vmul.f32 %v342, %v347
  %351 = vrot.lane.b32.xlu0 %v349, 32
  %v352 = vpop.permute.xlu0 %351
  %v354 = vadd.f32 %v344, %v352
  %v355 = vtanh.pop %v354
  %357 = vrot.lane.b32.xlu0 %v355, 64
  %v358 = vpop.permute.xlu0 %357
  %v360 = vmul.f32 %v342, %v358
  %362 = vrot.lane.b32.xlu0 %v360, 32
  %v363 = vpop.permute.xlu0 %362
  %365 = vst.msk [vmem:[#allocation3] sm:$0xff] %vm88, %v363
  %s366 = smul.u32 7, 2
  %s367 = smul.addr %s366, 8
  %s368 = scalar_lea.vmem [#allocation2], %s367
  %v369 = vld [vmem:[%s368 + $0x8] sm:$0xff]
  %370 = vmatpush.msra.mxu0 0.0
  %371 = vmatpush.msra.mxu0 0.0
  %372 = vmatpush.msra.mxu0 0.0
  %373 = vmatpush.msra.mxu0 0.0
  %374 = vmatpush.msra.mxu0 0.0
  %375 = vmatpush.msra.mxu0 0.0
  %376 = vmatpush.msra.mxu0 0.0
  %377 = vmatpush.msra.mxu0 0.0
  %378 = vmatpush.msra.mxu0 0.0
  %379 = vmatpush.msra.mxu0 0.0
  %380 = vmatpush.msra.mxu0 0.0
  %381 = vmatpush.msra.mxu0 0.0
  %382 = vmatpush.msra.mxu0 %v295
  %383 = vmatpush.msra.mxu0 %v294
  %384 = vmatpush.msra.mxu0 %v293
  %385 = vmatpush.msra.mxu0 %v292
  %386 = vmatmul.f32.gmra.mxu0 %v301
  %v387 = vpop.f32.mrf.mxu0
  %v388 = vadd.f32 0.0, %v387
  %389 = vdwg.mxu0
  %v390 = vadd.f32 %v369, %v388
  %v391 = vxor.u32 %v390, 2147483648
  %v392 = vmul.f32 %v391, 1.442695
  %v393 = vpow.pop %v392
  %v394 = vadd.f32 %v393, 1.0
  %v395 = vrcp.pop %v394
  %v396 = vmul.f32 %v394, %v395
  %v397 = vsub.f32 1.0, %v396
  %v398 = vmul.f32 %v395, %v397
  %v399 = vadd.f32 %v395, %v398
  %vm400 = vweird.f32 %v394
  %vm401 = vweird.f32 %v395
  %vm402 = vmor %vm400, %vm401
  %v403 = vsel %vm402, %v395, %v399
  %v404 = vand.u32 2147483647, %v394
  %vm405 = vcmp.eq.f32.partialorder %v404, 8.507059e+37
  %v406 = vand.u32 %v394, 2147483648
  %v407 = vor.u32 1.1754944e-38, %v406
  %v408 = vsel %vm405, %v407, %v403
  %v409 = vmul.f32 1.0, %v408
  %v410 = vtanh.pop %v390
  %v411 = vmul.f32 %v409, 0.0
  %413 = vrot.lane.b32.xlu0 %v410, 64
  %v414 = vpop.permute.xlu0 %413
  %v416 = vmul.f32 %v409, %v414
  %418 = vrot.lane.b32.xlu0 %v416, 32
  %v419 = vpop.permute.xlu0 %418
  %v421 = vadd.f32 %v411, %v419
  %v422 = vtanh.pop %v421
  %424 = vrot.lane.b32.xlu0 %v422, 64
  %v425 = vpop.permute.xlu0 %424
  %v427 = vmul.f32 %v409, %v425
  %429 = vrot.lane.b32.xlu0 %v427, 32
  %v430 = vpop.permute.xlu0 %429
  %s432 = sadd.s32 56, 64
  %s433 = scalar_lea.vmem [#allocation3], %s432
  %434 = vst.msk [vmem:[%s433] sm:$0xff] %vm88, %v430
  %s435 = smul.u32 1, 2
  %s436 = smul.addr %s435, 8
  %s437 = scalar_lea.vmem [#allocation2], %s436
  %v438 = vld [vmem:[%s437] sm:$0xff]
  %v439 = vsel %vm88, %v363, 0
  %441 = vmatpush.msra.mxu0 0.0
  %442 = vmatpush.msra.mxu0 0.0
  %443 = vmatpush.msra.mxu0 0.0
  %444 = vmatpush.msra.mxu0 0.0
  %445 = vmatpush.msra.mxu0 0.0
  %446 = vmatpush.msra.mxu0 0.0
  %447 = vmatpush.msra.mxu0 0.0
  %448 = vmatpush.msra.mxu0 0.0
  %449 = vmatpush.msra.mxu0 0.0
  %450 = vmatpush.msra.mxu0 0.0
  %451 = vmatpush.msra.mxu0 0.0
  %452 = vmatpush.msra.mxu0 0.0
  %453 = vmatpush.msra.mxu0 %v290
  %454 = vmatpush.msra.mxu0 %v289
  %455 = vmatpush.msra.mxu0 %v288
  %456 = vmatpush.msra.mxu0 %v287
  %457 = vmatmul.f32.gmra.mxu0 %v439
  %v458 = vpop.f32.mrf.mxu0
  %v459 = vadd.f32 0.0, %v458
  %460 = vdwg.mxu0
  %v461 = vadd.f32 %v438, %v459
  %v462 = vxor.u32 %v461, 2147483648
  %v463 = vmul.f32 %v462, 1.442695
  %v464 = vpow.pop %v463
  %v465 = vadd.f32 %v464, 1.0
  %v466 = vrcp.pop %v465
  %v467 = vmul.f32 %v465, %v466
  %v468 = vsub.f32 1.0, %v467
  %v469 = vmul.f32 %v466, %v468
  %v470 = vadd.f32 %v466, %v469
  %vm471 = vweird.f32 %v465
  %vm472 = vweird.f32 %v466
  %vm473 = vmor %vm471, %vm472
  %v474 = vsel %vm473, %v466, %v470
  %v475 = vand.u32 2147483647, %v465
  %vm476 = vcmp.eq.f32.partialorder %v475, 8.507059e+37
  %v477 = vand.u32 %v465, 2147483648
  %v478 = vor.u32 1.1754944e-38, %v477
  %v479 = vsel %vm476, %v478, %v474
  %v480 = vmul.f32 1.0, %v479
  %v481 = vtanh.pop %v461
  %v482 = vmul.f32 %v480, %v354
  %484 = vrot.lane.b32.xlu0 %v481, 64
  %v485 = vpop.permute.xlu0 %484
  %v487 = vmul.f32 %v480, %v485
  %489 = vrot.lane.b32.xlu0 %v487, 32
  %v490 = vpop.permute.xlu0 %489
  %v492 = vadd.f32 %v482, %v490
  %v493 = vtanh.pop %v492
  %495 = vrot.lane.b32.xlu0 %v493, 64
  %v496 = vpop.permute.xlu0 %495
  %v498 = vmul.f32 %v480, %v496
  %500 = vrot.lane.b32.xlu0 %v498, 32
  %v501 = vpop.permute.xlu0 %500
  %s503 = scalar_lea.vmem [#allocation3], 8
  %504 = vst.msk [vmem:[%s503] sm:$0xff] %vm88, %v501
  %s505 = smul.u32 6, 2
  %s506 = smul.addr %s505, 8
  %s507 = scalar_lea.vmem [#allocation2], %s506
  %v508 = vld [vmem:[%s507 + $0x8] sm:$0xff]
  %v509 = vsel %vm88, %v430, 0
  %511 = vmatpush.msra.mxu0 0.0
  %512 = vmatpush.msra.mxu0 0.0
  %513 = vmatpush.msra.mxu0 0.0
  %514 = vmatpush.msra.mxu0 0.0
  %515 = vmatpush.msra.mxu0 0.0
  %516 = vmatpush.msra.mxu0 0.0
  %517 = vmatpush.msra.mxu0 0.0
  %518 = vmatpush.msra.mxu0 0.0
  %519 = vmatpush.msra.mxu0 0.0
  %520 = vmatpush.msra.mxu0 0.0
  %521 = vmatpush.msra.mxu0 0.0
  %522 = vmatpush.msra.mxu0 0.0
  %523 = vmatpush.msra.mxu0 %v295
  %524 = vmatpush.msra.mxu0 %v294
  %525 = vmatpush.msra.mxu0 %v293
  %526 = vmatpush.msra.mxu0 %v292
  %527 = vmatmul.f32.gmra.mxu0 %v509
  %v528 = vpop.f32.mrf.mxu0
  %v529 = vadd.f32 0.0, %v528
  %530 = vdwg.mxu0
  %v531 = vadd.f32 %v508, %v529
  %v532 = vxor.u32 %v531, 2147483648
  %v533 = vmul.f32 %v532, 1.442695
  %v534 = vpow.pop %v533
  %v535 = vadd.f32 %v534, 1.0
  %v536 = vrcp.pop %v535
  %v537 = vmul.f32 %v535, %v536
  %v538 = vsub.f32 1.0, %v537
  %v539 = vmul.f32 %v536, %v538
  %v540 = vadd.f32 %v536, %v539
  %vm541 = vweird.f32 %v535
  %vm542 = vweird.f32 %v536
  %vm543 = vmor %vm541, %vm542
  %v544 = vsel %vm543, %v536, %v540
  %v545 = vand.u32 2147483647, %v535
  %vm546 = vcmp.eq.f32.partialorder %v545, 8.507059e+37
  %v547 = vand.u32 %v535, 2147483648
  %v548 = vor.u32 1.1754944e-38, %v547
  %v549 = vsel %vm546, %v548, %v544
  %v550 = vmul.f32 1.0, %v549
  %v551 = vtanh.pop %v531
  %v552 = vmul.f32 %v550, %v421
  %554 = vrot.lane.b32.xlu0 %v551, 64
  %v555 = vpop.permute.xlu0 %554
  %v557 = vmul.f32 %v550, %v555
  %559 = vrot.lane.b32.xlu0 %v557, 32
  %v560 = vpop.permute.xlu0 %559
  %v562 = vadd.f32 %v552, %v560
  %v563 = vtanh.pop %v562
  %565 = vrot.lane.b32.xlu0 %v563, 64
  %v566 = vpop.permute.xlu0 %565
  %v568 = vmul.f32 %v550, %v566
  %570 = vrot.lane.b32.xlu0 %v568, 32
  %v571 = vpop.permute.xlu0 %570
  %s573 = sadd.s32 48, 64
  %s574 = scalar_lea.vmem [#allocation3], %s573
  %575 = vst.msk [vmem:[%s574] sm:$0xff] %vm88, %v571
  %s576 = smul.u32 2, 2
  %s577 = smul.addr %s576, 8
  %s578 = scalar_lea.vmem [#allocation2], %s577
  %v579 = vld [vmem:[%s578] sm:$0xff]
  %v580 = vsel %vm88, %v501, 0
  %582 = vmatpush.msra.mxu0 0.0
  %583 = vmatpush.msra.mxu0 0.0
  %584 = vmatpush.msra.mxu0 0.0
  %585 = vmatpush.msra.mxu0 0.0
  %586 = vmatpush.msra.mxu0 0.0
  %587 = vmatpush.msra.mxu0 0.0
  %588 = vmatpush.msra.mxu0 0.0
  %589 = vmatpush.msra.mxu0 0.0
  %590 = vmatpush.msra.mxu0 0.0
  %591 = vmatpush.msra.mxu0 0.0
  %592 = vmatpush.msra.mxu0 0.0
  %593 = vmatpush.msra.mxu0 0.0
  %594 = vmatpush.msra.mxu0 %v290
  %595 = vmatpush.msra.mxu0 %v289
  %596 = vmatpush.msra.mxu0 %v288
  %597 = vmatpush.msra.mxu0 %v287
  %598 = vmatmul.f32.gmra.mxu0 %v580
  %v599 = vpop.f32.mrf.mxu0
  %v600 = vadd.f32 0.0, %v599
  %601 = vdwg.mxu0
  %v602 = vadd.f32 %v579, %v600
  %v603 = vxor.u32 %v602, 2147483648
  %v604 = vmul.f32 %v603, 1.442695
  %v605 = vpow.pop %v604
  %v606 = vadd.f32 %v605, 1.0
  %v607 = vrcp.pop %v606
  %v608 = vmul.f32 %v606, %v607
  %v609 = vsub.f32 1.0, %v608
  %v610 = vmul.f32 %v607, %v609
  %v611 = vadd.f32 %v607, %v610
  %vm612 = vweird.f32 %v606
  %vm613 = vweird.f32 %v607
  %vm614 = vmor %vm612, %vm613
  %v615 = vsel %vm614, %v607, %v611
  %v616 = vand.u32 2147483647, %v606
  %vm617 = vcmp.eq.f32.partialorder %v616, 8.507059e+37
  %v618 = vand.u32 %v606, 2147483648
  %v619 = vor.u32 1.1754944e-38, %v618
  %v620 = vsel %vm617, %v619, %v615
  %v621 = vmul.f32 1.0, %v620
  %v622 = vtanh.pop %v602
  %v623 = vmul.f32 %v621, %v492
  %625 = vrot.lane.b32.xlu0 %v622, 64
  %v626 = vpop.permute.xlu0 %625
  %v628 = vmul.f32 %v621, %v626
  %630 = vrot.lane.b32.xlu0 %v628, 32
  %v631 = vpop.permute.xlu0 %630
  %v633 = vadd.f32 %v623, %v631
  %v634 = vtanh.pop %v633
  %636 = vrot.lane.b32.xlu0 %v634, 64
  %v637 = vpop.permute.xlu0 %636
  %v639 = vmul.f32 %v621, %v637
  %641 = vrot.lane.b32.xlu0 %v639, 32
  %v642 = vpop.permute.xlu0 %641
  %s644 = scalar_lea.vmem [#allocation3], 16
  %645 = vst.msk [vmem:[%s644] sm:$0xff] %vm88, %v642
  %s646 = smul.u32 5, 2
  %s647 = smul.addr %s646, 8
  %s648 = scalar_lea.vmem [#allocation2], %s647
  %v649 = vld [vmem:[%s648 + $0x8] sm:$0xff]
  %v650 = vsel %vm88, %v571, 0
  %652 = vmatpush.msra.mxu0 0.0
  %653 = vmatpush.msra.mxu0 0.0
  %654 = vmatpush.msra.mxu0 0.0
  %655 = vmatpush.msra.mxu0 0.0
  %656 = vmatpush.msra.mxu0 0.0
  %657 = vmatpush.msra.mxu0 0.0
  %658 = vmatpush.msra.mxu0 0.0
  %659 = vmatpush.msra.mxu0 0.0
  %660 = vmatpush.msra.mxu0 0.0
  %661 = vmatpush.msra.mxu0 0.0
  %662 = vmatpush.msra.mxu0 0.0
  %663 = vmatpush.msra.mxu0 0.0
  %664 = vmatpush.msra.mxu0 %v295
  %665 = vmatpush.msra.mxu0 %v294
  %666 = vmatpush.msra.mxu0 %v293
  %667 = vmatpush.msra.mxu0 %v292
  %668 = vmatmul.f32.gmra.mxu0 %v650
  %v669 = vpop.f32.mrf.mxu0
  %v670 = vadd.f32 0.0, %v669
  %671 = vdwg.mxu0
  %v672 = vadd.f32 %v649, %v670
  %v673 = vxor.u32 %v672, 2147483648
  %v674 = vmul.f32 %v673, 1.442695
  %v675 = vpow.pop %v674
  %v676 = vadd.f32 %v675, 1.0
  %v677 = vrcp.pop %v676
  %v678 = vmul.f32 %v676, %v677
  %v679 = vsub.f32 1.0, %v678
  %v680 = vmul.f32 %v677, %v679
  %v681 = vadd.f32 %v677, %v680
  %vm682 = vweird.f32 %v676
  %vm683 = vweird.f32 %v677
  %vm684 = vmor %vm682, %vm683
  %v685 = vsel %vm684, %v677, %v681
  %v686 = vand.u32 2147483647, %v676
  %vm687 = vcmp.eq.f32.partialorder %v686, 8.507059e+37
  %v688 = vand.u32 %v676, 2147483648
  %v689 = vor.u32 1.1754944e-38, %v688
  %v690 = vsel %vm687, %v689, %v685
  %v691 = vmul.f32 1.0, %v690
  %v692 = vtanh.pop %v672
  %v693 = vmul.f32 %v691, %v562
  %695 = vrot.lane.b32.xlu0 %v692, 64
  %v696 = vpop.permute.xlu0 %695
  %v698 = vmul.f32 %v691, %v696
  %700 = vrot.lane.b32.xlu0 %v698, 32
  %v701 = vpop.permute.xlu0 %700
  %v703 = vadd.f32 %v693, %v701
  %v704 = vtanh.pop %v703
  %706 = vrot.lane.b32.xlu0 %v704, 64
  %v707 = vpop.permute.xlu0 %706
  %v709 = vmul.f32 %v691, %v707
  %711 = vrot.lane.b32.xlu0 %v709, 32
  %v712 = vpop.permute.xlu0 %711
  %s714 = sadd.s32 40, 64
  %s715 = scalar_lea.vmem [#allocation3], %s714
  %716 = vst.msk [vmem:[%s715] sm:$0xff] %vm88, %v712
  %s717 = smul.u32 3, 2
  %s718 = smul.addr %s717, 8
  %s719 = scalar_lea.vmem [#allocation2], %s718
  %v720 = vld [vmem:[%s719] sm:$0xff]
  %v721 = vsel %vm88, %v642, 0
  %723 = vmatpush.msra.mxu0 0.0
  %724 = vmatpush.msra.mxu0 0.0
  %725 = vmatpush.msra.mxu0 0.0
  %726 = vmatpush.msra.mxu0 0.0
  %727 = vmatpush.msra.mxu0 0.0
  %728 = vmatpush.msra.mxu0 0.0
  %729 = vmatpush.msra.mxu0 0.0
  %730 = vmatpush.msra.mxu0 0.0
  %731 = vmatpush.msra.mxu0 0.0
  %732 = vmatpush.msra.mxu0 0.0
  %733 = vmatpush.msra.mxu0 0.0
  %734 = vmatpush.msra.mxu0 0.0
  %735 = vmatpush.msra.mxu0 %v290
  %736 = vmatpush.msra.mxu0 %v289
  %737 = vmatpush.msra.mxu0 %v288
  %738 = vmatpush.msra.mxu0 %v287
  %739 = vmatmul.f32.gmra.mxu0 %v721
  %v740 = vpop.f32.mrf.mxu0
  %v741 = vadd.f32 0.0, %v740
  %742 = vdwg.mxu0
  %v743 = vadd.f32 %v720, %v741
  %v744 = vxor.u32 %v743, 2147483648
  %v745 = vmul.f32 %v744, 1.442695
  %v746 = vpow.pop %v745
  %v747 = vadd.f32 %v746, 1.0
  %v748 = vrcp.pop %v747
  %v749 = vmul.f32 %v747, %v748
  %v750 = vsub.f32 1.0, %v749
  %v751 = vmul.f32 %v748, %v750
  %v752 = vadd.f32 %v748, %v751
  %vm753 = vweird.f32 %v747
  %vm754 = vweird.f32 %v748
  %vm755 = vmor %vm753, %vm754
  %v756 = vsel %vm755, %v748, %v752
  %v757 = vand.u32 2147483647, %v747
  %vm758 = vcmp.eq.f32.partialorder %v757, 8.507059e+37
  %v759 = vand.u32 %v747, 2147483648
  %v760 = vor.u32 1.1754944e-38, %v759
  %v761 = vsel %vm758, %v760, %v756
  %v762 = vmul.f32 1.0, %v761
  %v763 = vtanh.pop %v743
  %v764 = vmul.f32 %v762, %v633
  %766 = vrot.lane.b32.xlu0 %v763, 64
  %v767 = vpop.permute.xlu0 %766
  %v769 = vmul.f32 %v762, %v767
  %771 = vrot.lane.b32.xlu0 %v769, 32
  %v772 = vpop.permute.xlu0 %771
  %v774 = vadd.f32 %v764, %v772
  %v775 = vtanh.pop %v774
  %777 = vrot.lane.b32.xlu0 %v775, 64
  %v778 = vpop.permute.xlu0 %777
  %v780 = vmul.f32 %v762, %v778
  %782 = vrot.lane.b32.xlu0 %v780, 32
  %v783 = vpop.permute.xlu0 %782
  %s785 = scalar_lea.vmem [#allocation3], 24
  %786 = vst.msk [vmem:[%s785] sm:$0xff] %vm88, %v783
  %s787 = smul.u32 4, 2
  %s788 = smul.addr %s787, 8
  %s789 = scalar_lea.vmem [#allocation2], %s788
  %v790 = vld [vmem:[%s789 + $0x8] sm:$0xff]
  %v791 = vsel %vm88, %v712, 0
  %793 = vmatpush.msra.mxu0 0.0
  %794 = vmatpush.msra.mxu0 0.0
  %795 = vmatpush.msra.mxu0 0.0
  %796 = vmatpush.msra.mxu0 0.0
  %797 = vmatpush.msra.mxu0 0.0
  %798 = vmatpush.msra.mxu0 0.0
  %799 = vmatpush.msra.mxu0 0.0
  %800 = vmatpush.msra.mxu0 0.0
  %801 = vmatpush.msra.mxu0 0.0
  %802 = vmatpush.msra.mxu0 0.0
  %803 = vmatpush.msra.mxu0 0.0
  %804 = vmatpush.msra.mxu0 0.0
  %805 = vmatpush.msra.mxu0 %v295
  %806 = vmatpush.msra.mxu0 %v294
  %807 = vmatpush.msra.mxu0 %v293
  %808 = vmatpush.msra.mxu0 %v292
  %809 = vmatmul.f32.gmra.mxu0 %v791
  %v810 = vpop.f32.mrf.mxu0
  %v811 = vadd.f32 0.0, %v810
  %812 = vdwg.mxu0
  %v813 = vadd.f32 %v790, %v811
  %v814 = vxor.u32 %v813, 2147483648
  %v815 = vmul.f32 %v814, 1.442695
  %v816 = vpow.pop %v815
  %v817 = vadd.f32 %v816, 1.0
  %v818 = vrcp.pop %v817
  %v819 = vmul.f32 %v817, %v818
  %v820 = vsub.f32 1.0, %v819
  %v821 = vmul.f32 %v818, %v820
  %v822 = vadd.f32 %v818, %v821
  %vm823 = vweird.f32 %v817
  %vm824 = vweird.f32 %v818
  %vm825 = vmor %vm823, %vm824
  %v826 = vsel %vm825, %v818, %v822
  %v827 = vand.u32 2147483647, %v817
  %vm828 = vcmp.eq.f32.partialorder %v827, 8.507059e+37
  %v829 = vand.u32 %v817, 2147483648
  %v830 = vor.u32 1.1754944e-38, %v829
  %v831 = vsel %vm828, %v830, %v826
  %v832 = vmul.f32 1.0, %v831
  %v833 = vtanh.pop %v813
  %v834 = vmul.f32 %v832, %v703
  %836 = vrot.lane.b32.xlu0 %v833, 64
  %v837 = vpop.permute.xlu0 %836
  %v839 = vmul.f32 %v832, %v837
  %841 = vrot.lane.b32.xlu0 %v839, 32
  %v842 = vpop.permute.xlu0 %841
  %v844 = vadd.f32 %v834, %v842
  %v845 = vtanh.pop %v844
  %847 = vrot.lane.b32.xlu0 %v845, 64
  %v848 = vpop.permute.xlu0 %847
  %v850 = vmul.f32 %v832, %v848
  %852 = vrot.lane.b32.xlu0 %v850, 32
  %v853 = vpop.permute.xlu0 %852
  %s855 = sadd.s32 32, 64
  %s856 = scalar_lea.vmem [#allocation3], %s855
  %857 = vst.msk [vmem:[%s856] sm:$0xff] %vm88, %v853
  %v858 = vld [vmem:[%s789] sm:$0xff]
  %v859 = vsel %vm88, %v783, 0
  %861 = vmatpush.msra.mxu0 0.0
  %862 = vmatpush.msra.mxu0 0.0
  %863 = vmatpush.msra.mxu0 0.0
  %864 = vmatpush.msra.mxu0 0.0
  %865 = vmatpush.msra.mxu0 0.0
  %866 = vmatpush.msra.mxu0 0.0
  %867 = vmatpush.msra.mxu0 0.0
  %868 = vmatpush.msra.mxu0 0.0
  %869 = vmatpush.msra.mxu0 0.0
  %870 = vmatpush.msra.mxu0 0.0
  %871 = vmatpush.msra.mxu0 0.0
  %872 = vmatpush.msra.mxu0 0.0
  %873 = vmatpush.msra.mxu0 %v290
  %874 = vmatpush.msra.mxu0 %v289
  %875 = vmatpush.msra.mxu0 %v288
  %876 = vmatpush.msra.mxu0 %v287
  %877 = vmatmul.f32.gmra.mxu0 %v859
  %v878 = vpop.f32.mrf.mxu0
  %v879 = vadd.f32 0.0, %v878
  %880 = vdwg.mxu0
  %v881 = vadd.f32 %v858, %v879
  %v882 = vxor.u32 %v881, 2147483648
  %v883 = vmul.f32 %v882, 1.442695
  %v884 = vpow.pop %v883
  %v885 = vadd.f32 %v884, 1.0
  %v886 = vrcp.pop %v885
  %v887 = vmul.f32 %v885, %v886
  %v888 = vsub.f32 1.0, %v887
  %v889 = vmul.f32 %v886, %v888
  %v890 = vadd.f32 %v886, %v889
  %vm891 = vweird.f32 %v885
  %vm892 = vweird.f32 %v886
  %vm893 = vmor %vm891, %vm892
  %v894 = vsel %vm893, %v886, %v890
  %v895 = vand.u32 2147483647, %v885
  %vm896 = vcmp.eq.f32.partialorder %v895, 8.507059e+37
  %v897 = vand.u32 %v885, 2147483648
  %v898 = vor.u32 1.1754944e-38, %v897
  %v899 = vsel %vm896, %v898, %v894
  %v900 = vmul.f32 1.0, %v899
  %v901 = vtanh.pop %v881
  %v902 = vmul.f32 %v900, %v774
  %904 = vrot.lane.b32.xlu0 %v901, 64
  %v905 = vpop.permute.xlu0 %904
  %v907 = vmul.f32 %v900, %v905
  %909 = vrot.lane.b32.xlu0 %v907, 32
  %v910 = vpop.permute.xlu0 %909
  %v912 = vadd.f32 %v902, %v910
  %v913 = vtanh.pop %v912
  %915 = vrot.lane.b32.xlu0 %v913, 64
  %v916 = vpop.permute.xlu0 %915
  %v918 = vmul.f32 %v900, %v916
  %920 = vrot.lane.b32.xlu0 %v918, 32
  %v921 = vpop.permute.xlu0 %920
  %s923 = scalar_lea.vmem [#allocation3], 32
  %924 = vst.msk [vmem:[%s923] sm:$0xff] %vm88, %v921
  %v925 = vld [vmem:[%s719 + $0x8] sm:$0xff]
  %v926 = vsel %vm88, %v853, 0
  %928 = vmatpush.msra.mxu0 0.0
  %929 = vmatpush.msra.mxu0 0.0
  %930 = vmatpush.msra.mxu0 0.0
  %931 = vmatpush.msra.mxu0 0.0
  %932 = vmatpush.msra.mxu0 0.0
  %933 = vmatpush.msra.mxu0 0.0
  %934 = vmatpush.msra.mxu0 0.0
  %935 = vmatpush.msra.mxu0 0.0
  %936 = vmatpush.msra.mxu0 0.0
  %937 = vmatpush.msra.mxu0 0.0
  %938 = vmatpush.msra.mxu0 0.0
  %939 = vmatpush.msra.mxu0 0.0
  %940 = vmatpush.msra.mxu0 %v295
  %941 = vmatpush.msra.mxu0 %v294
  %942 = vmatpush.msra.mxu0 %v293
  %943 = vmatpush.msra.mxu0 %v292
  %944 = vmatmul.f32.gmra.mxu0 %v926
  %v945 = vpop.f32.mrf.mxu0
  %v946 = vadd.f32 0.0, %v945
  %947 = vdwg.mxu0
  %v948 = vadd.f32 %v925, %v946
  %v949 = vxor.u32 %v948, 2147483648
  %v950 = vmul.f32 %v949, 1.442695
  %v951 = vpow.pop %v950
  %v952 = vadd.f32 %v951, 1.0
  %v953 = vrcp.pop %v952
  %v954 = vmul.f32 %v952, %v953
  %v955 = vsub.f32 1.0, %v954
  %v956 = vmul.f32 %v953, %v955
  %v957 = vadd.f32 %v953, %v956
  %vm958 = vweird.f32 %v952
  %vm959 = vweird.f32 %v953
  %vm960 = vmor %vm958, %vm959
  %v961 = vsel %vm960, %v953, %v957
  %v962 = vand.u32 2147483647, %v952
  %vm963 = vcmp.eq.f32.partialorder %v962, 8.507059e+37
  %v964 = vand.u32 %v952, 2147483648
  %v965 = vor.u32 1.1754944e-38, %v964
  %v966 = vsel %vm963, %v965, %v961
  %v967 = vmul.f32 1.0, %v966
  %v968 = vtanh.pop %v948
  %v969 = vmul.f32 %v967, %v844
  %971 = vrot.lane.b32.xlu0 %v968, 64
  %v972 = vpop.permute.xlu0 %971
  %v974 = vmul.f32 %v967, %v972
  %976 = vrot.lane.b32.xlu0 %v974, 32
  %v977 = vpop.permute.xlu0 %976
  %v979 = vadd.f32 %v969, %v977
  %v980 = vtanh.pop %v979
  %982 = vrot.lane.b32.xlu0 %v980, 64
  %v983 = vpop.permute.xlu0 %982
  %v985 = vmul.f32 %v967, %v983
  %987 = vrot.lane.b32.xlu0 %v985, 32
  %v988 = vpop.permute.xlu0 %987
  %s990 = sadd.s32 24, 64
  %s991 = scalar_lea.vmem [#allocation3], %s990
  %992 = vst.msk [vmem:[%s991] sm:$0xff] %vm88, %v988
  %v993 = vld [vmem:[%s648] sm:$0xff]
  %v994 = vsel %vm88, %v921, 0
  %996 = vmatpush.msra.mxu0 0.0
  %997 = vmatpush.msra.mxu0 0.0
  %998 = vmatpush.msra.mxu0 0.0
  %999 = vmatpush.msra.mxu0 0.0
  %1000 = vmatpush.msra.mxu0 0.0
  %1001 = vmatpush.msra.mxu0 0.0
  %1002 = vmatpush.msra.mxu0 0.0
  %1003 = vmatpush.msra.mxu0 0.0
  %1004 = vmatpush.msra.mxu0 0.0
  %1005 = vmatpush.msra.mxu0 0.0
  %1006 = vmatpush.msra.mxu0 0.0
  %1007 = vmatpush.msra.mxu0 0.0
  %1008 = vmatpush.msra.mxu0 %v290
  %1009 = vmatpush.msra.mxu0 %v289
  %1010 = vmatpush.msra.mxu0 %v288
  %1011 = vmatpush.msra.mxu0 %v287
  %1012 = vmatmul.f32.gmra.mxu0 %v994
  %v1013 = vpop.f32.mrf.mxu0
  %v1014 = vadd.f32 0.0, %v1013
  %1015 = vdwg.mxu0
  %v1016 = vadd.f32 %v993, %v1014
  %v1017 = vxor.u32 %v1016, 2147483648
  %v1018 = vmul.f32 %v1017, 1.442695
  %v1019 = vpow.pop %v1018
  %v1020 = vadd.f32 %v1019, 1.0
  %v1021 = vrcp.pop %v1020
  %v1022 = vmul.f32 %v1020, %v1021
  %v1023 = vsub.f32 1.0, %v1022
  %v1024 = vmul.f32 %v1021, %v1023
  %v1025 = vadd.f32 %v1021, %v1024
  %vm1026 = vweird.f32 %v1020
  %vm1027 = vweird.f32 %v1021
  %vm1028 = vmor %vm1026, %vm1027
  %v1029 = vsel %vm1028, %v1021, %v1025
  %v1030 = vand.u32 2147483647, %v1020
  %vm1031 = vcmp.eq.f32.partialorder %v1030, 8.507059e+37
  %v1032 = vand.u32 %v1020, 2147483648
  %v1033 = vor.u32 1.1754944e-38, %v1032
  %v1034 = vsel %vm1031, %v1033, %v1029
  %v1035 = vmul.f32 1.0, %v1034
  %v1036 = vtanh.pop %v1016
  %v1037 = vmul.f32 %v1035, %v912
  %1039 = vrot.lane.b32.xlu0 %v1036, 64
  %v1040 = vpop.permute.xlu0 %1039
  %v1042 = vmul.f32 %v1035, %v1040
  %1044 = vrot.lane.b32.xlu0 %v1042, 32
  %v1045 = vpop.permute.xlu0 %1044
  %v1047 = vadd.f32 %v1037, %v1045
  %v1048 = vtanh.pop %v1047
  %1050 = vrot.lane.b32.xlu0 %v1048, 64
  %v1051 = vpop.permute.xlu0 %1050
  %v1053 = vmul.f32 %v1035, %v1051
  %1055 = vrot.lane.b32.xlu0 %v1053, 32
  %v1056 = vpop.permute.xlu0 %1055
  %s1058 = scalar_lea.vmem [#allocation3], 40
  %1059 = vst.msk [vmem:[%s1058] sm:$0xff] %vm88, %v1056
  %v1060 = vld [vmem:[%s578 + $0x8] sm:$0xff]
  %v1061 = vsel %vm88, %v988, 0
  %1063 = vmatpush.msra.mxu0 0.0
  %1064 = vmatpush.msra.mxu0 0.0
  %1065 = vmatpush.msra.mxu0 0.0
  %1066 = vmatpush.msra.mxu0 0.0
  %1067 = vmatpush.msra.mxu0 0.0
  %1068 = vmatpush.msra.mxu0 0.0
  %1069 = vmatpush.msra.mxu0 0.0
  %1070 = vmatpush.msra.mxu0 0.0
  %1071 = vmatpush.msra.mxu0 0.0
  %1072 = vmatpush.msra.mxu0 0.0
  %1073 = vmatpush.msra.mxu0 0.0
  %1074 = vmatpush.msra.mxu0 0.0
  %1075 = vmatpush.msra.mxu0 %v295
  %1076 = vmatpush.msra.mxu0 %v294
  %1077 = vmatpush.msra.mxu0 %v293
  %1078 = vmatpush.msra.mxu0 %v292
  %1079 = vmatmul.f32.gmra.mxu0 %v1061
  %v1080 = vpop.f32.mrf.mxu0
  %v1081 = vadd.f32 0.0, %v1080
  %1082 = vdwg.mxu0
  %v1083 = vadd.f32 %v1060, %v1081
  %v1084 = vxor.u32 %v1083, 2147483648
  %v1085 = vmul.f32 %v1084, 1.442695
  %v1086 = vpow.pop %v1085
  %v1087 = vadd.f32 %v1086, 1.0
  %v1088 = vrcp.pop %v1087
  %v1089 = vmul.f32 %v1087, %v1088
  %v1090 = vsub.f32 1.0, %v1089
  %v1091 = vmul.f32 %v1088, %v1090
  %v1092 = vadd.f32 %v1088, %v1091
  %vm1093 = vweird.f32 %v1087
  %vm1094 = vweird.f32 %v1088
  %vm1095 = vmor %vm1093, %vm1094
  %v1096 = vsel %vm1095, %v1088, %v1092
  %v1097 = vand.u32 2147483647, %v1087
  %vm1098 = vcmp.eq.f32.partialorder %v1097, 8.507059e+37
  %v1099 = vand.u32 %v1087, 2147483648
  %v1100 = vor.u32 1.1754944e-38, %v1099
  %v1101 = vsel %vm1098, %v1100, %v1096
  %v1102 = vmul.f32 1.0, %v1101
  %v1103 = vtanh.pop %v1083
  %v1104 = vmul.f32 %v1102, %v979
  %1106 = vrot.lane.b32.xlu0 %v1103, 64
  %v1107 = vpop.permute.xlu0 %1106
  %v1109 = vmul.f32 %v1102, %v1107
  %1111 = vrot.lane.b32.xlu0 %v1109, 32
  %v1112 = vpop.permute.xlu0 %1111
  %v1114 = vadd.f32 %v1104, %v1112
  %v1115 = vtanh.pop %v1114
  %1117 = vrot.lane.b32.xlu0 %v1115, 64
  %v1118 = vpop.permute.xlu0 %1117
  %v1120 = vmul.f32 %v1102, %v1118
  %1122 = vrot.lane.b32.xlu0 %v1120, 32
  %v1123 = vpop.permute.xlu0 %1122
  %s1125 = sadd.s32 16, 64
  %s1126 = scalar_lea.vmem [#allocation3], %s1125
  %1127 = vst.msk [vmem:[%s1126] sm:$0xff] %vm88, %v1123
  %v1128 = vld [vmem:[%s507] sm:$0xff]
  %v1129 = vsel %vm88, %v1056, 0
  %1131 = vmatpush.msra.mxu0 0.0
  %1132 = vmatpush.msra.mxu0 0.0
  %1133 = vmatpush.msra.mxu0 0.0
  %1134 = vmatpush.msra.mxu0 0.0
  %1135 = vmatpush.msra.mxu0 0.0
  %1136 = vmatpush.msra.mxu0 0.0
  %1137 = vmatpush.msra.mxu0 0.0
  %1138 = vmatpush.msra.mxu0 0.0
  %1139 = vmatpush.msra.mxu0 0.0
  %1140 = vmatpush.msra.mxu0 0.0
  %1141 = vmatpush.msra.mxu0 0.0
  %1142 = vmatpush.msra.mxu0 0.0
  %1143 = vmatpush.msra.mxu0 %v290
  %1144 = vmatpush.msra.mxu0 %v289
  %1145 = vmatpush.msra.mxu0 %v288
  %1146 = vmatpush.msra.mxu0 %v287
  %1147 = vmatmul.f32.gmra.mxu0 %v1129
  %v1148 = vpop.f32.mrf.mxu0
  %v1149 = vadd.f32 0.0, %v1148
  %1150 = vdwg.mxu0
  %v1151 = vadd.f32 %v1128, %v1149
  %v1152 = vxor.u32 %v1151, 2147483648
  %v1153 = vmul.f32 %v1152, 1.442695
  %v1154 = vpow.pop %v1153
  %v1155 = vadd.f32 %v1154, 1.0
  %v1156 = vrcp.pop %v1155
  %v1157 = vmul.f32 %v1155, %v1156
  %v1158 = vsub.f32 1.0, %v1157
  %v1159 = vmul.f32 %v1156, %v1158
  %v1160 = vadd.f32 %v1156, %v1159
  %vm1161 = vweird.f32 %v1155
  %vm1162 = vweird.f32 %v1156
  %vm1163 = vmor %vm1161, %vm1162
  %v1164 = vsel %vm1163, %v1156, %v1160
  %v1165 = vand.u32 2147483647, %v1155
  %vm1166 = vcmp.eq.f32.partialorder %v1165, 8.507059e+37
  %v1167 = vand.u32 %v1155, 2147483648
  %v1168 = vor.u32 1.1754944e-38, %v1167
  %v1169 = vsel %vm1166, %v1168, %v1164
  %v1170 = vmul.f32 1.0, %v1169
  %v1171 = vtanh.pop %v1151
  %v1172 = vmul.f32 %v1170, %v1047
  %1174 = vrot.lane.b32.xlu0 %v1171, 64
  %v1175 = vpop.permute.xlu0 %1174
  %v1177 = vmul.f32 %v1170, %v1175
  %1179 = vrot.lane.b32.xlu0 %v1177, 32
  %v1180 = vpop.permute.xlu0 %1179
  %v1182 = vadd.f32 %v1172, %v1180
  %v1183 = vtanh.pop %v1182
  %1185 = vrot.lane.b32.xlu0 %v1183, 64
  %v1186 = vpop.permute.xlu0 %1185
  %v1188 = vmul.f32 %v1170, %v1186
  %1190 = vrot.lane.b32.xlu0 %v1188, 32
  %v1191 = vpop.permute.xlu0 %1190
  %s1193 = scalar_lea.vmem [#allocation3], 48
  %1194 = vst.msk [vmem:[%s1193] sm:$0xff] %vm88, %v1191
  %v1195 = vld [vmem:[%s437 + $0x8] sm:$0xff]
  %v1196 = vsel %vm88, %v1123, 0
  %1198 = vmatpush.msra.mxu0 0.0
  %1199 = vmatpush.msra.mxu0 0.0
  %1200 = vmatpush.msra.mxu0 0.0
  %1201 = vmatpush.msra.mxu0 0.0
  %1202 = vmatpush.msra.mxu0 0.0
  %1203 = vmatpush.msra.mxu0 0.0
  %1204 = vmatpush.msra.mxu0 0.0
  %1205 = vmatpush.msra.mxu0 0.0
  %1206 = vmatpush.msra.mxu0 0.0
  %1207 = vmatpush.msra.mxu0 0.0
  %1208 = vmatpush.msra.mxu0 0.0
  %1209 = vmatpush.msra.mxu0 0.0
  %1210 = vmatpush.msra.mxu0 %v295
  %1211 = vmatpush.msra.mxu0 %v294
  %1212 = vmatpush.msra.mxu0 %v293
  %1213 = vmatpush.msra.mxu0 %v292
  %1214 = vmatmul.f32.gmra.mxu0 %v1196
  %v1215 = vpop.f32.mrf.mxu0
  %v1216 = vadd.f32 0.0, %v1215
  %1217 = vdwg.mxu0
  %v1218 = vadd.f32 %v1195, %v1216
  %v1219 = vxor.u32 %v1218, 2147483648
  %v1220 = vmul.f32 %v1219, 1.442695
  %v1221 = vpow.pop %v1220
  %v1222 = vadd.f32 %v1221, 1.0
  %v1223 = vrcp.pop %v1222
  %v1224 = vmul.f32 %v1222, %v1223
  %v1225 = vsub.f32 1.0, %v1224
  %v1226 = vmul.f32 %v1223, %v1225
  %v1227 = vadd.f32 %v1223, %v1226
  %vm1228 = vweird.f32 %v1222
  %vm1229 = vweird.f32 %v1223
  %vm1230 = vmor %vm1228, %vm1229
  %v1231 = vsel %vm1230, %v1223, %v1227
  %v1232 = vand.u32 2147483647, %v1222
  %vm1233 = vcmp.eq.f32.partialorder %v1232, 8.507059e+37
  %v1234 = vand.u32 %v1222, 2147483648
  %v1235 = vor.u32 1.1754944e-38, %v1234
  %v1236 = vsel %vm1233, %v1235, %v1231
  %v1237 = vmul.f32 1.0, %v1236
  %v1238 = vtanh.pop %v1218
  %v1239 = vmul.f32 %v1237, %v1114
  %1241 = vrot.lane.b32.xlu0 %v1238, 64
  %v1242 = vpop.permute.xlu0 %1241
  %v1244 = vmul.f32 %v1237, %v1242
  %1246 = vrot.lane.b32.xlu0 %v1244, 32
  %v1247 = vpop.permute.xlu0 %1246
  %v1249 = vadd.f32 %v1239, %v1247
  %v1250 = vtanh.pop %v1249
  %1252 = vrot.lane.b32.xlu0 %v1250, 64
  %v1253 = vpop.permute.xlu0 %1252
  %v1255 = vmul.f32 %v1237, %v1253
  %1257 = vrot.lane.b32.xlu0 %v1255, 32
  %v1258 = vpop.permute.xlu0 %1257
  %s1260 = sadd.s32 8, 64
  %s1261 = scalar_lea.vmem [#allocation3], %s1260
  %1262 = vst.msk [vmem:[%s1261] sm:$0xff] %vm88, %v1258
  %v1263 = vld [vmem:[%s368] sm:$0xff]
  %v1264 = vsel %vm88, %v1191, 0
  %1266 = vmatpush.msra.mxu0 0.0
  %1267 = vmatpush.msra.mxu0 0.0
  %1268 = vmatpush.msra.mxu0 0.0
  %1269 = vmatpush.msra.mxu0 0.0
  %1270 = vmatpush.msra.mxu0 0.0
  %1271 = vmatpush.msra.mxu0 0.0
  %1272 = vmatpush.msra.mxu0 0.0
  %1273 = vmatpush.msra.mxu0 0.0
  %1274 = vmatpush.msra.mxu0 0.0
  %1275 = vmatpush.msra.mxu0 0.0
  %1276 = vmatpush.msra.mxu0 0.0
  %1277 = vmatpush.msra.mxu0 0.0
  %1278 = vmatpush.msra.mxu0 %v290
  %1279 = vmatpush.msra.mxu0 %v289
  %1280 = vmatpush.msra.mxu0 %v288
  %1281 = vmatpush.msra.mxu0 %v287
  %1282 = vmatmul.f32.gmra.mxu0 %v1264
  %v1283 = vpop.f32.mrf.mxu0
  %v1284 = vadd.f32 0.0, %v1283
  %1285 = vdwg.mxu0
  %v1286 = vadd.f32 %v1263, %v1284
  %v1287 = vxor.u32 %v1286, 2147483648
  %v1288 = vmul.f32 %v1287, 1.442695
  %v1289 = vpow.pop %v1288
  %v1290 = vadd.f32 %v1289, 1.0
  %v1291 = vrcp.pop %v1290
  %v1292 = vmul.f32 %v1290, %v1291
  %v1293 = vsub.f32 1.0, %v1292
  %v1294 = vmul.f32 %v1291, %v1293
  %v1295 = vadd.f32 %v1291, %v1294
  %vm1296 = vweird.f32 %v1290
  %vm1297 = vweird.f32 %v1291
  %vm1298 = vmor %vm1296, %vm1297
  %v1299 = vsel %vm1298, %v1291, %v1295
  %v1300 = vand.u32 2147483647, %v1290
  %vm1301 = vcmp.eq.f32.partialorder %v1300, 8.507059e+37
  %v1302 = vand.u32 %v1290, 2147483648
  %v1303 = vor.u32 1.1754944e-38, %v1302
  %v1304 = vsel %vm1301, %v1303, %v1299
  %v1305 = vmul.f32 1.0, %v1304
  %v1306 = vtanh.pop %v1286
  %v1307 = vmul.f32 %v1305, %v1182
  %1309 = vrot.lane.b32.xlu0 %v1306, 64
  %v1310 = vpop.permute.xlu0 %1309
  %v1312 = vmul.f32 %v1305, %v1310
  %1314 = vrot.lane.b32.xlu0 %v1312, 32
  %v1315 = vpop.permute.xlu0 %1314
  %v1317 = vadd.f32 %v1307, %v1315
  %v1318 = vtanh.pop %v1317
  %1320 = vrot.lane.b32.xlu0 %v1318, 64
  %v1321 = vpop.permute.xlu0 %1320
  %v1323 = vmul.f32 %v1305, %v1321
  %1325 = vrot.lane.b32.xlu0 %v1323, 32
  %v1326 = vpop.permute.xlu0 %1325
  %s1328 = scalar_lea.vmem [#allocation3], 56
  %1329 = vst.msk [vmem:[%s1328] sm:$0xff] %vm88, %v1326
  %v1330 = vld [vmem:[%s298 + $0x8] sm:$0xff]
  %v1331 = vsel %vm88, %v1258, 0
  %1333 = vmatpush.msra.mxu0 0.0
  %1334 = vmatpush.msra.mxu0 0.0
  %1335 = vmatpush.msra.mxu0 0.0
  %1336 = vmatpush.msra.mxu0 0.0
  %1337 = vmatpush.msra.mxu0 0.0
  %1338 = vmatpush.msra.mxu0 0.0
  %1339 = vmatpush.msra.mxu0 0.0
  %1340 = vmatpush.msra.mxu0 0.0
  %1341 = vmatpush.msra.mxu0 0.0
  %1342 = vmatpush.msra.mxu0 0.0
  %1343 = vmatpush.msra.mxu0 0.0
  %1344 = vmatpush.msra.mxu0 0.0
  %1345 = vmatpush.msra.mxu0 %v295
  %1346 = vmatpush.msra.mxu0 %v294
  %1347 = vmatpush.msra.mxu0 %v293
  %1348 = vmatpush.msra.mxu0 %v292
  %1349 = vmatmul.f32.gmra.mxu0 %v1331
  %v1350 = vpop.f32.mrf.mxu0
  %v1351 = vadd.f32 0.0, %v1350
  %1352 = vdwg.mxu0
  %v1353 = vadd.f32 %v1330, %v1351
  %v1354 = vxor.u32 %v1353, 2147483648
  %v1355 = vmul.f32 %v1354, 1.442695
  %v1356 = vpow.pop %v1355
  %v1357 = vadd.f32 %v1356, 1.0
  %v1358 = vrcp.pop %v1357
  %v1359 = vmul.f32 %v1357, %v1358
  %v1360 = vsub.f32 1.0, %v1359
  %v1361 = vmul.f32 %v1358, %v1360
  %v1362 = vadd.f32 %v1358, %v1361
  %vm1363 = vweird.f32 %v1357
  %vm1364 = vweird.f32 %v1358
  %vm1365 = vmor %vm1363, %vm1364
  %v1366 = vsel %vm1365, %v1358, %v1362
  %v1367 = vand.u32 2147483647, %v1357
  %vm1368 = vcmp.eq.f32.partialorder %v1367, 8.507059e+37
  %v1369 = vand.u32 %v1357, 2147483648
  %v1370 = vor.u32 1.1754944e-38, %v1369
  %v1371 = vsel %vm1368, %v1370, %v1366
  %v1372 = vmul.f32 1.0, %v1371
  %v1373 = vtanh.pop %v1353
  %v1374 = vmul.f32 %v1372, %v1249
  %1376 = vrot.lane.b32.xlu0 %v1373, 64
  %v1377 = vpop.permute.xlu0 %1376
  %v1379 = vmul.f32 %v1372, %v1377
  %1381 = vrot.lane.b32.xlu0 %v1379, 32
  %v1382 = vpop.permute.xlu0 %1381
  %v1384 = vadd.f32 %v1374, %v1382
  %v1385 = vtanh.pop %v1384
  %1387 = vrot.lane.b32.xlu0 %v1385, 64
  %v1388 = vpop.permute.xlu0 %1387
  %v1390 = vmul.f32 %v1372, %v1388
  %1392 = vrot.lane.b32.xlu0 %v1390, 32
  %v1393 = vpop.permute.xlu0 %1392
  %s1395 = sadd.s32 0, 64
  %s1396 = scalar_lea.vmem [#allocation3], %s1395
  %1397 = vst.msk [vmem:[%s1396] sm:$0xff] %vm88, %v1393
  %v1398 = vld [vmem:[#allocation3] sm:$0xff]
  %v1399 = vld [vmem:[#allocation3 + $0x8] sm:$0xff]
  %v1400 = vld [vmem:[#allocation3 + $0x10] sm:$0xff]
  %v1401 = vld [vmem:[#allocation3 + $0x18] sm:$0xff]
  %v1402 = vld [vmem:[#allocation3 + $0x20] sm:$0xff]
  %v1403 = vld [vmem:[#allocation3 + $0x28] sm:$0xff]
  %v1404 = vld [vmem:[#allocation3 + $0x30] sm:$0xff]
  %v1405 = vld [vmem:[#allocation3 + $0x38] sm:$0xff]
  %v1406 = vld [vmem:[%s5] sm:$0xff]
  %v1407 = vld [vmem:[%s5 + $0x8] sm:$0xff]
  %v1408 = vld [vmem:[%s5 + $0x10] sm:$0xff]
  %v1409 = vld [vmem:[%s5 + $0x18] sm:$0xff]
  %s1410 = scalar_lea.vmem [#allocation3], 64
  %v1411 = vld [vmem:[%s1410] sm:$0xff]
  %v1412 = vld [vmem:[%s1410 + $0x8] sm:$0xff]
  %v1413 = vld [vmem:[%s1410 + $0x10] sm:$0xff]
  %v1414 = vld [vmem:[%s1410 + $0x18] sm:$0xff]
  %v1415 = vld [vmem:[%s1410 + $0x20] sm:$0xff]
  %v1416 = vld [vmem:[%s1410 + $0x28] sm:$0xff]
  %v1417 = vld [vmem:[%s1410 + $0x30] sm:$0xff]
  %v1418 = vld [vmem:[%s1410 + $0x38] sm:$0xff]
  %s1419 = scalar_lea.vmem %s5, 32
  %v1420 = vld [vmem:[%s1419] sm:$0xff]
  %v1421 = vld [vmem:[%s1419 + $0x8] sm:$0xff]
  %v1422 = vld [vmem:[%s1419 + $0x10] sm:$0xff]
  %v1423 = vld [vmem:[%s1419 + $0x18] sm:$0xff]
  %v1425 = vsel %vm88, %v1411, 0
  %v1428 = vsel %vm88, %v1412, 0
  %v1431 = vsel %vm88, %v1413, 0
  %v1434 = vsel %vm88, %v1414, 0
  %v1437 = vsel %vm88, %v1415, 0
  %v1440 = vsel %vm88, %v1416, 0
  %v1443 = vsel %vm88, %v1417, 0
  %v1446 = vsel %vm88, %v1418, 0
  %1448 = vmatpush.msra.mxu0 0.0
  %1449 = vmatpush.msra.mxu0 0.0
  %1450 = vmatpush.msra.mxu0 0.0
  %1451 = vmatpush.msra.mxu0 0.0
  %1452 = vmatpush.msra.mxu0 0.0
  %1453 = vmatpush.msra.mxu0 0.0
  %1454 = vmatpush.msra.mxu0 0.0
  %1455 = vmatpush.msra.mxu0 0.0
  %1456 = vmatpush.msra.mxu0 0.0
  %1457 = vmatpush.msra.mxu0 0.0
  %1458 = vmatpush.msra.mxu0 0.0
  %1459 = vmatpush.msra.mxu0 0.0
  %1460 = vmatpush.msra.mxu0 %v1423
  %1461 = vmatpush.msra.mxu0 %v1422
  %1462 = vmatpush.msra.mxu0 %v1421
  %1463 = vmatpush.msra.mxu0 %v1420
  %1464 = vmatmul.f32.gmra.mxu0 %v1425
  %v1465 = vpop.f32.mrf.mxu0
  %v1466 = vadd.f32 0.0, %v1465
  %1467 = vmatmul.f32.gmra.mxu0 %v1428
  %v1468 = vpop.f32.mrf.mxu0
  %v1469 = vadd.f32 0.0, %v1468
  %1470 = vmatmul.f32.gmra.mxu0 %v1431
  %v1471 = vpop.f32.mrf.mxu0
  %v1472 = vadd.f32 0.0, %v1471
  %1473 = vmatmul.f32.gmra.mxu0 %v1434
  %v1474 = vpop.f32.mrf.mxu0
  %v1475 = vadd.f32 0.0, %v1474
  %1476 = vmatmul.f32.gmra.mxu0 %v1437
  %v1477 = vpop.f32.mrf.mxu0
  %v1478 = vadd.f32 0.0, %v1477
  %1479 = vmatmul.f32.gmra.mxu0 %v1440
  %v1480 = vpop.f32.mrf.mxu0
  %v1481 = vadd.f32 0.0, %v1480
  %1482 = vmatmul.f32.gmra.mxu0 %v1443
  %v1483 = vpop.f32.mrf.mxu0
  %v1484 = vadd.f32 0.0, %v1483
  %1485 = vmatmul.f32.gmra.mxu0 %v1446
  %v1486 = vpop.f32.mrf.mxu0
  %v1487 = vadd.f32 0.0, %v1486
  %1488 = vdwg.mxu0
  %v1490 = vsel %vm88, %v1398, 0
  %v1493 = vsel %vm88, %v1399, 0
  %v1496 = vsel %vm88, %v1400, 0
  %v1499 = vsel %vm88, %v1401, 0
  %v1502 = vsel %vm88, %v1402, 0
  %v1505 = vsel %vm88, %v1403, 0
  %v1508 = vsel %vm88, %v1404, 0
  %v1511 = vsel %vm88, %v1405, 0
  %1513 = vmatpush.msra.mxu0 0.0
  %1514 = vmatpush.msra.mxu0 0.0
  %1515 = vmatpush.msra.mxu0 0.0
  %1516 = vmatpush.msra.mxu0 0.0
  %1517 = vmatpush.msra.mxu0 0.0
  %1518 = vmatpush.msra.mxu0 0.0
  %1519 = vmatpush.msra.mxu0 0.0
  %1520 = vmatpush.msra.mxu0 0.0
  %1521 = vmatpush.msra.mxu0 0.0
  %1522 = vmatpush.msra.mxu0 0.0
  %1523 = vmatpush.msra.mxu0 0.0
  %1524 = vmatpush.msra.mxu0 0.0
  %1525 = vmatpush.msra.mxu0 %v1409
  %1526 = vmatpush.msra.mxu0 %v1408
  %1527 = vmatpush.msra.mxu0 %v1407
  %1528 = vmatpush.msra.mxu0 %v1406
  %1529 = vmatmul.f32.gmra.mxu0 %v1490
  %v1530 = vpop.f32.mrf.mxu0
  %v1531 = vadd.f32 %v1466, %v1530
  %1532 = vmatmul.f32.gmra.mxu0 %v1493
  %v1533 = vpop.f32.mrf.mxu0
  %v1534 = vadd.f32 %v1469, %v1533
  %1535 = vmatmul.f32.gmra.mxu0 %v1496
  %v1536 = vpop.f32.mrf.mxu0
  %v1537 = vadd.f32 %v1472, %v1536
  %1538 = vmatmul.f32.gmra.mxu0 %v1499
  %v1539 = vpop.f32.mrf.mxu0
  %v1540 = vadd.f32 %v1475, %v1539
  %1541 = vmatmul.f32.gmra.mxu0 %v1502
  %v1542 = vpop.f32.mrf.mxu0
  %v1543 = vadd.f32 %v1478, %v1542
  %1544 = vmatmul.f32.gmra.mxu0 %v1505
  %v1545 = vpop.f32.mrf.mxu0
  %v1546 = vadd.f32 %v1481, %v1545
  %1547 = vmatmul.f32.gmra.mxu0 %v1508
  %v1548 = vpop.f32.mrf.mxu0
  %v1549 = vadd.f32 %v1484, %v1548
  %1550 = vmatmul.f32.gmra.mxu0 %v1511
  %v1551 = vpop.f32.mrf.mxu0
  %v1552 = vadd.f32 %v1487, %v1551
  %1553 = vdwg.mxu0
  %v1554 = vld [vmem:[%s6] sm:$0x1]
  %v1556 = vperm.slane %v1554, 0
  %v1558 = vadd.f32 %v1531, %v1556
  %v1559 = vadd.f32 %v1534, %v1556
  %v1560 = vadd.f32 %v1537, %v1556
  %v1561 = vadd.f32 %v1540, %v1556
  %v1562 = vadd.f32 %v1543, %v1556
  %v1563 = vadd.f32 %v1546, %v1556
  %v1564 = vadd.f32 %v1549, %v1556
  %v1565 = vadd.f32 %v1552, %v1556
  %vm1566 = vcmask 64512
  %1567 = vst.msk [vmem:[%s7] sm:$0xff] %vm1566, %v1558
  %1568 = vst.msk [vmem:[%s7 + $0x8] sm:$0xff] %vm1566, %v1559
  %1569 = vst.msk [vmem:[%s7 + $0x10] sm:$0xff] %vm1566, %v1560
  %1570 = vst.msk [vmem:[%s7 + $0x18] sm:$0xff] %vm1566, %v1561
  %1571 = vst.msk [vmem:[%s7 + $0x20] sm:$0xff] %vm1566, %v1562
  %1572 = vst.msk [vmem:[%s7 + $0x28] sm:$0xff] %vm1566, %v1563
  %1573 = vst.msk [vmem:[%s7 + $0x30] sm:$0xff] %vm1566, %v1564
  %1574 = vst.msk [vmem:[%s7 + $0x38] sm:$0xff] %vm1566, %v1565
  // Predicated region
  $region30: #{tpu_custom_call.1} parent=0 // pred_check
    _
  $region31: #{tpu_custom_call.1} parent=0 // pred_check_branch
    %1576 = sbr.rel (0) target = $region33
  $region32: #{tpu_custom_call.1} parent=0 // pred_region
    _
  $region33: #{tpu_custom_call.1} parent=0 // pred_fallthru
    _
  // Predicated region
  $region34: #{tpu_custom_call.1} parent=0 // pred_check
    _
  $region35: #{tpu_custom_call.1} parent=0 // pred_check_branch
    %1578 = sbr.rel (0) target = $region37
  $region36: #{tpu_custom_call.1} parent=0 // pred_region
    _
  $region37: #{tpu_custom_call.1} parent=0 // pred_fallthru
    _

</llo_original>
